<compile_context>
chip_gen: v7x
topology: tpu7x:2x2x1
jax: 0.10.0
libtpu: 0.0.40
codegen_flags: <defaults>
</compile_context>

<pallas_src>
import numpy as np
import jax
import jax.numpy as jnp
from jax.experimental import pallas as pl
from jax.experimental.pallas import tpu as pltpu

NEG_INF = -1e30
ATT_SLOPE = 0.2    # GATConv leaky_relu negative_slope
ACT_SLOPE = 0.01   # nn.functional.leaky_relu default


def _leaky_relu(x, slope):
    return jnp.where(x >= 0, x, slope * x)


def _gat_layer(h, adj_ref, w_fused, c_src, bias, C):
    """One GATConv (heads=1, concat=True, residual=True), eval mode.

    h       : (Ng, Fin) f32 node features of this layer
    adj_ref : (Ng, Ng) int8 edge mask ref (re-read per layer; no O(N^2) value hoisted)
    w_fused : (Fin, 2C+1) bf16 = [W | W_res | W @ att_dst^T]
    c_src   : (1, Fin)    bf16 = att_src @ W^T  (so z.att_src == c_src . h)
    bias    : (1, C)      f32
    """
    hb = h.astype(jnp.bfloat16)
    f = jnp.dot(hb, w_fused, preferred_element_type=jnp.float32)      # (Ng, 2C+1)
    z = f[:, :C]                                                      # x @ W
    r = f[:, C:2 * C]                                                 # x @ W_res (residual)
    u = f[:, 2 * C:2 * C + 1]                                         # (Ng, 1)  z . att_dst
    vT = jnp.einsum("of,nf->on", c_src, hb,
                    preferred_element_type=jnp.float32)               # (1, Ng)  z . att_src
    s = _leaky_relu(u + vT, ATT_SLOPE)                                # (Ng, Ng) raw scores
    adjf = adj_ref[...].astype(jnp.float32)                           # int8 -> f32 (cheap)
    e = jnp.where(adjf > 0.0, s, NEG_INF)                             # off-edge -> -1e30
    e = e - jnp.max(e, axis=-1, keepdims=True)
    p = jnp.exp(e)
    p = p * pl.reciprocal(jnp.sum(p, axis=-1, keepdims=True), approx=True)
    agg = jnp.dot(p.astype(jnp.bfloat16), z.astype(jnp.bfloat16),
                  preferred_element_type=jnp.float32)                 # (Ng, C)
    return agg + r + bias


def protein_encoder_kernel(xa_ref, adj_ref, w0_ref, wr_ref, misc_ref, out_ref):
    # misc slab rows: [0:4]   att_src coeff rows (len = layer input width, zero padded)
    #                 [4:8]   per-layer conv biases (f32)
    #                 [8:8+C] out-Linear weight rows   [8+C] out-Linear bias row
    C = wr_ref.shape[1]
    fp = xa_ref.shape[-1]          # f_in + 2  ([x | alpha | valid])
    f_in = fp - 2

    # Layer 0 consumes the full packed slab; the alpha/valid rows of w0 are zero.
    h = xa_ref[...]                                                   # (Ng, fp) f32
    for li in range(4):            # initial_conv, conv1, conv2, conv3 (unrolled: tiny)
        w = w0_ref[...] if li == 0 else wr_ref[li - 1]                # bf16
        fin = w.shape[0]
        c_src = misc_ref[li:li + 1, :fin].astype(jnp.bfloat16)        # (1, fin)
        bias = misc_ref[4 + li:5 + li, :C]                            # (1, C) f32
        h = _gat_layer(h, adj_ref, w, c_src, bias, C)
        if li < 3:                 # leaky_relu after the first three convs only
            h = _leaky_relu(h, ACT_SLOPE)

    alpha = xa_ref[:, f_in:f_in + 1]                                  # (Ng, 1)
    valid = xa_ref[:, f_in + 1:f_in + 2]                              # (Ng, 1) 1=real, 0=pad
    # torch.mul(alpha, hidden) then per-graph global max pool (pad nodes masked out).
    scored = alpha * h + (valid - 1.0) * (-NEG_INF)
    pooled = jnp.max(scored, axis=0, keepdims=True)                   # (1, C)
    pooled = _leaky_relu(pooled, ACT_SLOPE)

    w_out = misc_ref[8:8 + C, :].astype(jnp.bfloat16)                 # (C, out_pad)
    b_out = misc_ref[8 + C:9 + C, :]                                  # (1, out_pad) f32
    out_ref[...] = (jnp.dot(pooled.astype(jnp.bfloat16), w_out,
                            preferred_element_type=jnp.float32)
                    + b_out)                                          # lane-dense store


def pack_params(params, f_in, embed, out_dim):
    """Host-side one-time fusion of the 22 parameter arrays into 3 slabs."""
    C = embed
    fp = f_in + 2                       # [x | alpha | valid]
    fw = 2 * C + 1                      # [W | W_res | W@att_dst^T]
    out_pad = ((out_dim + 127) // 128) * 128
    assert fp <= out_pad and C <= out_pad, "misc slab lanes too narrow"

    P = [np.asarray(p, np.float32) for p in params]

    def fuse(li, n_rows):
        W, a_src, a_dst, W_res, bias = P[5 * li:5 * li + 5]
        fin = W.shape[0]
        wf = np.zeros((n_rows, fw), np.float32)
        wf[:fin, :C] = W
        wf[:fin, C:2 * C] = W_res
        wf[:fin, 2 * C] = (W @ a_dst.T)[:, 0]
        c = np.zeros((out_pad,), np.float32)
        c[:fin] = (a_src @ W.T)[0]
        return wf, c, bias[0]

    w0, c0, b0 = fuse(0, fp)            # alpha/valid rows stay zero
    rest = [fuse(li, C) for li in (1, 2, 3)]

    misc = np.zeros((9 + C, out_pad), np.float32)
    misc[0] = c0
    misc[4, :C] = b0
    for li, (_, c, b) in enumerate(rest, start=1):
        misc[li] = c
        misc[4 + li, :C] = b
    misc[8:8 + C, :out_dim] = P[20]     # out Linear weight (C, out_dim)
    misc[8 + C, :out_dim] = P[21][0]    # out Linear bias

    return dict(
        w0=jnp.asarray(w0, jnp.bfloat16),                               # (fp, 2C+1)
        wr=jnp.asarray(np.stack([w for w, _, _ in rest]), jnp.bfloat16),  # (3, C, 2C+1)
        misc=jnp.asarray(misc, jnp.float32),                            # (9+C, out_pad)
        out_pad=out_pad,
    )


def protein_encoder(x, adj, alpha, valid, packed, out_dim):
    """x: (B,Ng,F_in); adj: (B,Ng,Ng) [dst,src] with self-loops; alpha,valid: (B,Ng,1)."""
    B, Ng, f_in = x.shape
    C = packed["wr"].shape[1]
    fp = f_in + 2
    out_pad = packed["out_pad"]

    xa = jnp.concatenate([x.astype(jnp.float32),
                          alpha.astype(jnp.float32),
                          valid.astype(jnp.float32)], axis=-1)          # (B, Ng, fp)
    adj_i8 = (adj > 0).astype(jnp.int8)                                 # 1 byte/elem to VMEM

    grid_spec = pltpu.PrefetchScalarGridSpec(
        num_scalar_prefetch=0,
        grid=(B,),
        in_specs=[
            pl.BlockSpec((None, Ng, fp), lambda b: (b, 0, 0)),          # per-graph node slab
            pl.BlockSpec((None, Ng, Ng), lambda b: (b, 0, 0)),          # per-graph adjacency
            pl.BlockSpec((fp, 2 * C + 1), lambda b: (0, 0)),            # fused layer-0 weights
            pl.BlockSpec((3, C, 2 * C + 1), lambda b: (0, 0, 0)),       # fused conv1-3 weights
            pl.BlockSpec((9 + C, out_pad), lambda b: (0, 0)),           # misc slab
        ],
        out_specs=pl.BlockSpec((None, 1, out_pad), lambda b: (b, 0, 0)),
    )
    out = pl.pallas_call(
        protein_encoder_kernel,
        out_shape=jax.ShapeDtypeStruct((B, 1, out_pad), jnp.float32),
        grid_spec=grid_spec,
        compiler_params=pltpu.CompilerParams(
            dimension_semantics=("parallel",),       # graphs shard across TCs on v7x
            vmem_limit_bytes=32 * 1024 * 1024,       # explicit scoped-VMEM budget
        ),
    )(xa, adj_i8, packed["w0"], packed["wr"], packed["misc"])
    return out[:, 0, :out_dim]


def init_params(key, f_in, embed, out_dim):
    """Deterministic synthetic init matching the module's parameter shapes."""
    params = []
    dims_in = [f_in, embed, embed, embed]   # initial_conv, conv1, conv2, conv3
    keys = jax.random.split(key, 4 * 5 + 2)
    ki = 0
    for fin in dims_in:
        W = 0.1 * jax.random.normal(keys[ki], (fin, embed), jnp.float32); ki += 1
        a_src = 0.1 * jax.random.normal(keys[ki], (1, embed), jnp.float32); ki += 1
        a_dst = 0.1 * jax.random.normal(keys[ki], (1, embed), jnp.float32); ki += 1
        W_res = 0.1 * jax.random.normal(keys[ki], (fin, embed), jnp.float32); ki += 1
        bias = 0.1 * jax.random.normal(keys[ki], (1, embed), jnp.float32); ki += 1
        params += [W, a_src, a_dst, W_res, bias]
    w_out = 0.1 * jax.random.normal(keys[ki], (embed, out_dim), jnp.float32); ki += 1
    b_out = 0.1 * jax.random.normal(keys[ki], (1, out_dim), jnp.float32); ki += 1
    params += [w_out, b_out]
    return params


if __name__ == "__main__":
    B = 2             # graphs in the batch (one grid step / TensorCore each)
    NG = 8            # nodes per graph (pad ragged graphs to NG, mark pads valid=0)
    F_IN = 93         # xt_features
    EMBED = 32        # smiles_node_embed_dim
    OUT_DIM = 64      # protein_encoder_dim

    key = jax.random.PRNGKey(0)
    k_x, k_alpha, k_params = jax.random.split(key, 3)

    # node features (PyTorch casts to double; we compute in f32/bf16)
    x = jax.random.normal(k_x, (B, NG, F_IN), jnp.float32)
    # per-node attention scalar `alpha` (broadcast over features)
    alpha = jax.random.uniform(k_alpha, (B, NG, 1), jnp.float32)
    valid = jnp.ones((B, NG, 1), jnp.float32)         # no padding nodes in this toy batch

    # deterministic graph structure: one bidirectional ring per graph + self-loops
    adj_np = np.zeros((B, NG, NG), dtype=np.float32)
    for g in range(B):
        for i in range(NG):
            j = (i + 1) % NG
            adj_np[g, j, i] = 1.0
            adj_np[g, i, j] = 1.0
        adj_np[g] += np.eye(NG, dtype=np.float32)      # self-loops (add_self_loops=True)
    adj = jnp.asarray(np.minimum(adj_np, 1.0))

    params = init_params(k_params, F_IN, EMBED, OUT_DIM)
    packed = pack_params(params, F_IN, EMBED, OUT_DIM)

    run = jax.jit(lambda x_, adj_, alpha_, valid_:
                  protein_encoder(x_, adj_, alpha_, valid_, packed, OUT_DIM))
    out = jax.block_until_ready(run(x, adj, alpha, valid))
    assert out.shape == (B, OUT_DIM), out.shape
    assert bool(jnp.all(jnp.isfinite(out)))
    print("KERNEL_OK")
</pallas_src>

<mosaic_0001>
module attributes {stable_mosaic.version = 11 : i64} {
  func.func @protein_encoder_kernel(%arg0: i32, %arg1: memref<1x8x95xf32, #tpu.memory_space<vmem>>, %arg2: memref<1x8x8xi8, #tpu.memory_space<vmem>>, %arg3: memref<95x65xbf16, #tpu.memory_space<vmem>>, %arg4: memref<3x32x65xbf16, #tpu.memory_space<vmem>>, %arg5: memref<41x128xf32, #tpu.memory_space<vmem>>, %arg6: memref<1x1x128xf32, #tpu.memory_space<vmem>>) attributes {dimension_semantics = [#tpu.dimension_semantics<parallel>], iteration_bounds = array<i64: 2>, scalar_prefetch = 0 : i64, scratch_operands = 0 : i64, tpu.core_type = #tpu.core_type<tc>, window_params = [{transform_indices = @transform_0, window_bounds = array<i64: 1, 8, 95>}, {transform_indices = @transform_1, window_bounds = array<i64: 1, 8, 8>}, {pipeline_mode = #tpu.pipeline_mode<synchronous>, transform_indices = @transform_2, window_bounds = array<i64: 95, 65>}, {pipeline_mode = #tpu.pipeline_mode<synchronous>, transform_indices = @transform_3, window_bounds = array<i64: 3, 32, 65>}, {pipeline_mode = #tpu.pipeline_mode<synchronous>, transform_indices = @transform_4, window_bounds = array<i64: 41, 128>}, {transform_indices = @transform_5, window_bounds = array<i64: 1, 1, 128>}]} {
    %c0 = arith.constant 0 : index
    %c0_0 = arith.constant 0 : index
    %c0_1 = arith.constant 0 : index
    %0 = vector.load %arg1[%c0, %c0_0, %c0_1] : memref<1x8x95xf32, #tpu.memory_space<vmem>>, vector<1x8x95xf32>
    %1 = vector.shape_cast %0 : vector<1x8x95xf32> to vector<8x95xf32>
    %c0_2 = arith.constant 0 : index
    %c0_3 = arith.constant 0 : index
    %2 = vector.load %arg3[%c0_2, %c0_3] : memref<95x65xbf16, #tpu.memory_space<vmem>>, vector<95x65xbf16>
    %c0_4 = arith.constant 0 : index
    %c0_5 = arith.constant 0 : index
    %3 = vector.load %arg5[%c0_4, %c0_5] : memref<41x128xf32, #tpu.memory_space<vmem>>, vector<1x95xf32>
    %4 = arith.truncf %3 : vector<1x95xf32> to vector<1x95xbf16>
    %c4 = arith.constant 4 : index
    %c0_6 = arith.constant 0 : index
    %5 = vector.load %arg5[%c4, %c0_6] : memref<41x128xf32, #tpu.memory_space<vmem>>, vector<1x32xf32>
    %6 = arith.truncf %1 : vector<8x95xf32> to vector<8x95xbf16>
    %cst = arith.constant dense<0.000000e+00> : vector<8x65xf32>
    %7 = tpu.matmul %6, %2, %cst {dimension_numbers = #tpu.dot_dimension_numbers<[1], [0], [0], [1], [0, 0, 1, 1], [], []>} : vector<8x95xbf16>, vector<95x65xbf16>, vector<8x65xf32> -> vector<8x65xf32>
    %8 = vector.extract_strided_slice %7 {offsets = [0, 0], sizes = [8, 32], strides = [1, 1]} : vector<8x65xf32> to vector<8x32xf32>
    %9 = vector.extract_strided_slice %7 {offsets = [0, 32], sizes = [8, 32], strides = [1, 1]} : vector<8x65xf32> to vector<8x32xf32>
    %10 = vector.extract_strided_slice %7 {offsets = [0, 64], sizes = [8, 1], strides = [1, 1]} : vector<8x65xf32> to vector<8x1xf32>
    "tpu.trace_start"() <{level = 10 : i32, message = "of,nf->on"}> : () -> ()
    %cst_7 = arith.constant dense<0.000000e+00> : vector<1x8xf32>
    %11 = tpu.matmul %4, %6, %cst_7 {dimension_numbers = #tpu.dot_dimension_numbers<[1], [1], [0], [0], [0, 0, 1, 0], [], []>} : vector<1x95xbf16>, vector<8x95xbf16>, vector<1x8xf32> -> vector<1x8xf32>
    "tpu.trace_stop"() : () -> ()
    %12 = vector.broadcast %10 : vector<8x1xf32> to vector<8x8xf32>
    %13 = vector.broadcast %11 : vector<1x8xf32> to vector<8x8xf32>
    %14 = arith.addf %12, %13 : vector<8x8xf32>
    %cst_8 = arith.constant 0.000000e+00 : f32
    %15 = vector.broadcast %cst_8 : f32 to vector<8x8xf32>
    %16 = arith.cmpf oge, %14, %15 : vector<8x8xf32>
    %cst_9 = arith.constant 2.000000e-01 : f32
    %17 = vector.broadcast %cst_9 : f32 to vector<8x8xf32>
    %18 = arith.mulf %17, %14 : vector<8x8xf32>
    %19 = arith.select %16, %14, %18 : vector<8x8xi1>, vector<8x8xf32>
    %c0_10 = arith.constant 0 : index
    %c0_11 = arith.constant 0 : index
    %c0_12 = arith.constant 0 : index
    %20 = vector.load %arg2[%c0_10, %c0_11, %c0_12] : memref<1x8x8xi8, #tpu.memory_space<vmem>>, vector<1x8x8xi8>
    %21 = vector.shape_cast %20 : vector<1x8x8xi8> to vector<8x8xi8>
    %22 = arith.sitofp %21 : vector<8x8xi8> to vector<8x8xf32>
    %cst_13 = arith.constant 0.000000e+00 : f32
    %23 = vector.broadcast %cst_13 : f32 to vector<8x8xf32>
    %24 = arith.cmpf ogt, %22, %23 : vector<8x8xf32>
    %cst_14 = arith.constant -1.000000e+30 : f32
    %25 = vector.broadcast %cst_14 : f32 to vector<8x8xf32>
    %26 = arith.select %24, %19, %25 : vector<8x8xi1>, vector<8x8xf32>
    %cst_15 = arith.constant dense<0xFF800000> : vector<8xf32>
    %27 = vector.multi_reduction <maximumf>, %26, %cst_15 [1] : vector<8x8xf32> to vector<8xf32>
    %28 = vector.shape_cast %27 : vector<8xf32> to vector<8x1xf32>
    %29 = vector.broadcast %28 : vector<8x1xf32> to vector<8x8xf32>
    %30 = arith.subf %26, %29 : vector<8x8xf32>
    %31 = math.exp %30 : vector<8x8xf32>
    %cst_16 = arith.constant dense<0.000000e+00> : vector<8xf32>
    %32 = vector.multi_reduction <add>, %31, %cst_16 [1] : vector<8x8xf32> to vector<8xf32>
    %33 = vector.shape_cast %32 : vector<8xf32> to vector<8x1xf32>
    %34 = tpu.reciprocal %33 {approx = true} : vector<8x1xf32> -> vector<8x1xf32>
    %35 = vector.broadcast %34 : vector<8x1xf32> to vector<8x8xf32>
    %36 = arith.mulf %31, %35 : vector<8x8xf32>
    %37 = arith.truncf %36 : vector<8x8xf32> to vector<8x8xbf16>
    %38 = arith.truncf %8 : vector<8x32xf32> to vector<8x32xbf16>
    %cst_17 = arith.constant dense<0.000000e+00> : vector<8x32xf32>
    %39 = tpu.matmul %37, %38, %cst_17 {dimension_numbers = #tpu.dot_dimension_numbers<[1], [0], [0], [1], [0, 0, 1, 1], [], []>} : vector<8x8xbf16>, vector<8x32xbf16>, vector<8x32xf32> -> vector<8x32xf32>
    %40 = arith.addf %39, %9 : vector<8x32xf32>
    %41 = vector.broadcast %5 : vector<1x32xf32> to vector<8x32xf32>
    %42 = arith.addf %40, %41 : vector<8x32xf32>
    %cst_18 = arith.constant 0.000000e+00 : f32
    %43 = vector.broadcast %cst_18 : f32 to vector<8x32xf32>
    %44 = arith.cmpf oge, %42, %43 : vector<8x32xf32>
    %cst_19 = arith.constant 0.00999999977 : f32
    %45 = vector.broadcast %cst_19 : f32 to vector<8x32xf32>
    %46 = arith.mulf %45, %42 : vector<8x32xf32>
    %47 = arith.select %44, %42, %46 : vector<8x32xi1>, vector<8x32xf32>
    %c0_20 = arith.constant 0 : index
    %c0_21 = arith.constant 0 : index
    %c0_22 = arith.constant 0 : index
    %48 = vector.load %arg4[%c0_20, %c0_21, %c0_22] : memref<3x32x65xbf16, #tpu.memory_space<vmem>>, vector<1x32x65xbf16>
    %49 = vector.shape_cast %48 : vector<1x32x65xbf16> to vector<32x65xbf16>
    %c1 = arith.constant 1 : index
    %c0_23 = arith.constant 0 : index
    %50 = vector.load %arg5[%c1, %c0_23] : memref<41x128xf32, #tpu.memory_space<vmem>>, vector<1x32xf32>
    %51 = arith.truncf %50 : vector<1x32xf32> to vector<1x32xbf16>
    %c5 = arith.constant 5 : index
    %c0_24 = arith.constant 0 : index
    %52 = vector.load %arg5[%c5, %c0_24] : memref<41x128xf32, #tpu.memory_space<vmem>>, vector<1x32xf32>
    %53 = arith.truncf %47 : vector<8x32xf32> to vector<8x32xbf16>
    %cst_25 = arith.constant dense<0.000000e+00> : vector<8x65xf32>
    %54 = tpu.matmul %53, %49, %cst_25 {dimension_numbers = #tpu.dot_dimension_numbers<[1], [0], [0], [1], [0, 0, 1, 1], [], []>} : vector<8x32xbf16>, vector<32x65xbf16>, vector<8x65xf32> -> vector<8x65xf32>
    %55 = vector.extract_strided_slice %54 {offsets = [0, 0], sizes = [8, 32], strides = [1, 1]} : vector<8x65xf32> to vector<8x32xf32>
    %56 = vector.extract_strided_slice %54 {offsets = [0, 32], sizes = [8, 32], strides = [1, 1]} : vector<8x65xf32> to vector<8x32xf32>
    %57 = vector.extract_strided_slice %54 {offsets = [0, 64], sizes = [8, 1], strides = [1, 1]} : vector<8x65xf32> to vector<8x1xf32>
    "tpu.trace_start"() <{level = 10 : i32, message = "of,nf->on"}> : () -> ()
    %cst_26 = arith.constant dense<0.000000e+00> : vector<1x8xf32>
    %58 = tpu.matmul %51, %53, %cst_26 {dimension_numbers = #tpu.dot_dimension_numbers<[1], [1], [0], [0], [0, 0, 1, 0], [], []>} : vector<1x32xbf16>, vector<8x32xbf16>, vector<1x8xf32> -> vector<1x8xf32>
    "tpu.trace_stop"() : () -> ()
    %59 = vector.broadcast %57 : vector<8x1xf32> to vector<8x8xf32>
    %60 = vector.broadcast %58 : vector<1x8xf32> to vector<8x8xf32>
    %61 = arith.addf %59, %60 : vector<8x8xf32>
    %cst_27 = arith.constant 0.000000e+00 : f32
    %62 = vector.broadcast %cst_27 : f32 to vector<8x8xf32>
    %63 = arith.cmpf oge, %61, %62 : vector<8x8xf32>
    %cst_28 = arith.constant 2.000000e-01 : f32
    %64 = vector.broadcast %cst_28 : f32 to vector<8x8xf32>
    %65 = arith.mulf %64, %61 : vector<8x8xf32>
    %66 = arith.select %63, %61, %65 : vector<8x8xi1>, vector<8x8xf32>
    %c0_29 = arith.constant 0 : index
    %c0_30 = arith.constant 0 : index
    %c0_31 = arith.constant 0 : index
    %67 = vector.load %arg2[%c0_29, %c0_30, %c0_31] : memref<1x8x8xi8, #tpu.memory_space<vmem>>, vector<1x8x8xi8>
    %68 = vector.shape_cast %67 : vector<1x8x8xi8> to vector<8x8xi8>
    %69 = arith.sitofp %68 : vector<8x8xi8> to vector<8x8xf32>
    %cst_32 = arith.constant 0.000000e+00 : f32
    %70 = vector.broadcast %cst_32 : f32 to vector<8x8xf32>
    %71 = arith.cmpf ogt, %69, %70 : vector<8x8xf32>
    %cst_33 = arith.constant -1.000000e+30 : f32
    %72 = vector.broadcast %cst_33 : f32 to vector<8x8xf32>
    %73 = arith.select %71, %66, %72 : vector<8x8xi1>, vector<8x8xf32>
    %cst_34 = arith.constant dense<0xFF800000> : vector<8xf32>
    %74 = vector.multi_reduction <maximumf>, %73, %cst_34 [1] : vector<8x8xf32> to vector<8xf32>
    %75 = vector.shape_cast %74 : vector<8xf32> to vector<8x1xf32>
    %76 = vector.broadcast %75 : vector<8x1xf32> to vector<8x8xf32>
    %77 = arith.subf %73, %76 : vector<8x8xf32>
    %78 = math.exp %77 : vector<8x8xf32>
    %cst_35 = arith.constant dense<0.000000e+00> : vector<8xf32>
    %79 = vector.multi_reduction <add>, %78, %cst_35 [1] : vector<8x8xf32> to vector<8xf32>
    %80 = vector.shape_cast %79 : vector<8xf32> to vector<8x1xf32>
    %81 = tpu.reciprocal %80 {approx = true} : vector<8x1xf32> -> vector<8x1xf32>
    %82 = vector.broadcast %81 : vector<8x1xf32> to vector<8x8xf32>
    %83 = arith.mulf %78, %82 : vector<8x8xf32>
    %84 = arith.truncf %83 : vector<8x8xf32> to vector<8x8xbf16>
    %85 = arith.truncf %55 : vector<8x32xf32> to vector<8x32xbf16>
    %cst_36 = arith.constant dense<0.000000e+00> : vector<8x32xf32>
    %86 = tpu.matmul %84, %85, %cst_36 {dimension_numbers = #tpu.dot_dimension_numbers<[1], [0], [0], [1], [0, 0, 1, 1], [], []>} : vector<8x8xbf16>, vector<8x32xbf16>, vector<8x32xf32> -> vector<8x32xf32>
    %87 = arith.addf %86, %56 : vector<8x32xf32>
    %88 = vector.broadcast %52 : vector<1x32xf32> to vector<8x32xf32>
    %89 = arith.addf %87, %88 : vector<8x32xf32>
    %cst_37 = arith.constant 0.000000e+00 : f32
    %90 = vector.broadcast %cst_37 : f32 to vector<8x32xf32>
    %91 = arith.cmpf oge, %89, %90 : vector<8x32xf32>
    %cst_38 = arith.constant 0.00999999977 : f32
    %92 = vector.broadcast %cst_38 : f32 to vector<8x32xf32>
    %93 = arith.mulf %92, %89 : vector<8x32xf32>
    %94 = arith.select %91, %89, %93 : vector<8x32xi1>, vector<8x32xf32>
    %c1_39 = arith.constant 1 : index
    %c0_40 = arith.constant 0 : index
    %c0_41 = arith.constant 0 : index
    %95 = vector.load %arg4[%c1_39, %c0_40, %c0_41] : memref<3x32x65xbf16, #tpu.memory_space<vmem>>, vector<1x32x65xbf16>
    %96 = vector.shape_cast %95 : vector<1x32x65xbf16> to vector<32x65xbf16>
    %c2 = arith.constant 2 : index
    %c0_42 = arith.constant 0 : index
    %97 = vector.load %arg5[%c2, %c0_42] : memref<41x128xf32, #tpu.memory_space<vmem>>, vector<1x32xf32>
    %98 = arith.truncf %97 : vector<1x32xf32> to vector<1x32xbf16>
    %c6 = arith.constant 6 : index
    %c0_43 = arith.constant 0 : index
    %99 = vector.load %arg5[%c6, %c0_43] : memref<41x128xf32, #tpu.memory_space<vmem>>, vector<1x32xf32>
    %100 = arith.truncf %94 : vector<8x32xf32> to vector<8x32xbf16>
    %cst_44 = arith.constant dense<0.000000e+00> : vector<8x65xf32>
    %101 = tpu.matmul %100, %96, %cst_44 {dimension_numbers = #tpu.dot_dimension_numbers<[1], [0], [0], [1], [0, 0, 1, 1], [], []>} : vector<8x32xbf16>, vector<32x65xbf16>, vector<8x65xf32> -> vector<8x65xf32>
    %102 = vector.extract_strided_slice %101 {offsets = [0, 0], sizes = [8, 32], strides = [1, 1]} : vector<8x65xf32> to vector<8x32xf32>
    %103 = vector.extract_strided_slice %101 {offsets = [0, 32], sizes = [8, 32], strides = [1, 1]} : vector<8x65xf32> to vector<8x32xf32>
    %104 = vector.extract_strided_slice %101 {offsets = [0, 64], sizes = [8, 1], strides = [1, 1]} : vector<8x65xf32> to vector<8x1xf32>
    "tpu.trace_start"() <{level = 10 : i32, message = "of,nf->on"}> : () -> ()
    %cst_45 = arith.constant dense<0.000000e+00> : vector<1x8xf32>
    %105 = tpu.matmul %98, %100, %cst_45 {dimension_numbers = #tpu.dot_dimension_numbers<[1], [1], [0], [0], [0, 0, 1, 0], [], []>} : vector<1x32xbf16>, vector<8x32xbf16>, vector<1x8xf32> -> vector<1x8xf32>
    "tpu.trace_stop"() : () -> ()
    %106 = vector.broadcast %104 : vector<8x1xf32> to vector<8x8xf32>
    %107 = vector.broadcast %105 : vector<1x8xf32> to vector<8x8xf32>
    %108 = arith.addf %106, %107 : vector<8x8xf32>
    %cst_46 = arith.constant 0.000000e+00 : f32
    %109 = vector.broadcast %cst_46 : f32 to vector<8x8xf32>
    %110 = arith.cmpf oge, %108, %109 : vector<8x8xf32>
    %cst_47 = arith.constant 2.000000e-01 : f32
    %111 = vector.broadcast %cst_47 : f32 to vector<8x8xf32>
    %112 = arith.mulf %111, %108 : vector<8x8xf32>
    %113 = arith.select %110, %108, %112 : vector<8x8xi1>, vector<8x8xf32>
    %c0_48 = arith.constant 0 : index
    %c0_49 = arith.constant 0 : index
    %c0_50 = arith.constant 0 : index
    %114 = vector.load %arg2[%c0_48, %c0_49, %c0_50] : memref<1x8x8xi8, #tpu.memory_space<vmem>>, vector<1x8x8xi8>
    %115 = vector.shape_cast %114 : vector<1x8x8xi8> to vector<8x8xi8>
    %116 = arith.sitofp %115 : vector<8x8xi8> to vector<8x8xf32>
    %cst_51 = arith.constant 0.000000e+00 : f32
    %117 = vector.broadcast %cst_51 : f32 to vector<8x8xf32>
    %118 = arith.cmpf ogt, %116, %117 : vector<8x8xf32>
    %cst_52 = arith.constant -1.000000e+30 : f32
    %119 = vector.broadcast %cst_52 : f32 to vector<8x8xf32>
    %120 = arith.select %118, %113, %119 : vector<8x8xi1>, vector<8x8xf32>
    %cst_53 = arith.constant dense<0xFF800000> : vector<8xf32>
    %121 = vector.multi_reduction <maximumf>, %120, %cst_53 [1] : vector<8x8xf32> to vector<8xf32>
    %122 = vector.shape_cast %121 : vector<8xf32> to vector<8x1xf32>
    %123 = vector.broadcast %122 : vector<8x1xf32> to vector<8x8xf32>
    %124 = arith.subf %120, %123 : vector<8x8xf32>
    %125 = math.exp %124 : vector<8x8xf32>
    %cst_54 = arith.constant dense<0.000000e+00> : vector<8xf32>
    %126 = vector.multi_reduction <add>, %125, %cst_54 [1] : vector<8x8xf32> to vector<8xf32>
    %127 = vector.shape_cast %126 : vector<8xf32> to vector<8x1xf32>
    %128 = tpu.reciprocal %127 {approx = true} : vector<8x1xf32> -> vector<8x1xf32>
    %129 = vector.broadcast %128 : vector<8x1xf32> to vector<8x8xf32>
    %130 = arith.mulf %125, %129 : vector<8x8xf32>
    %131 = arith.truncf %130 : vector<8x8xf32> to vector<8x8xbf16>
    %132 = arith.truncf %102 : vector<8x32xf32> to vector<8x32xbf16>
    %cst_55 = arith.constant dense<0.000000e+00> : vector<8x32xf32>
    %133 = tpu.matmul %131, %132, %cst_55 {dimension_numbers = #tpu.dot_dimension_numbers<[1], [0], [0], [1], [0, 0, 1, 1], [], []>} : vector<8x8xbf16>, vector<8x32xbf16>, vector<8x32xf32> -> vector<8x32xf32>
    %134 = arith.addf %133, %103 : vector<8x32xf32>
    %135 = vector.broadcast %99 : vector<1x32xf32> to vector<8x32xf32>
    %136 = arith.addf %134, %135 : vector<8x32xf32>
    %cst_56 = arith.constant 0.000000e+00 : f32
    %137 = vector.broadcast %cst_56 : f32 to vector<8x32xf32>
    %138 = arith.cmpf oge, %136, %137 : vector<8x32xf32>
    %cst_57 = arith.constant 0.00999999977 : f32
    %139 = vector.broadcast %cst_57 : f32 to vector<8x32xf32>
    %140 = arith.mulf %139, %136 : vector<8x32xf32>
    %141 = arith.select %138, %136, %140 : vector<8x32xi1>, vector<8x32xf32>
    %c2_58 = arith.constant 2 : index
    %c0_59 = arith.constant 0 : index
    %c0_60 = arith.constant 0 : index
    %142 = vector.load %arg4[%c2_58, %c0_59, %c0_60] : memref<3x32x65xbf16, #tpu.memory_space<vmem>>, vector<1x32x65xbf16>
    %143 = vector.shape_cast %142 : vector<1x32x65xbf16> to vector<32x65xbf16>
    %c3 = arith.constant 3 : index
    %c0_61 = arith.constant 0 : index
    %144 = vector.load %arg5[%c3, %c0_61] : memref<41x128xf32, #tpu.memory_space<vmem>>, vector<1x32xf32>
    %145 = arith.truncf %144 : vector<1x32xf32> to vector<1x32xbf16>
    %c7 = arith.constant 7 : index
    %c0_62 = arith.constant 0 : index
    %146 = vector.load %arg5[%c7, %c0_62] : memref<41x128xf32, #tpu.memory_space<vmem>>, vector<1x32xf32>
    %147 = arith.truncf %141 : vector<8x32xf32> to vector<8x32xbf16>
    %cst_63 = arith.constant dense<0.000000e+00> : vector<8x65xf32>
    %148 = tpu.matmul %147, %143, %cst_63 {dimension_numbers = #tpu.dot_dimension_numbers<[1], [0], [0], [1], [0, 0, 1, 1], [], []>} : vector<8x32xbf16>, vector<32x65xbf16>, vector<8x65xf32> -> vector<8x65xf32>
    %149 = vector.extract_strided_slice %148 {offsets = [0, 0], sizes = [8, 32], strides = [1, 1]} : vector<8x65xf32> to vector<8x32xf32>
    %150 = vector.extract_strided_slice %148 {offsets = [0, 32], sizes = [8, 32], strides = [1, 1]} : vector<8x65xf32> to vector<8x32xf32>
    %151 = vector.extract_strided_slice %148 {offsets = [0, 64], sizes = [8, 1], strides = [1, 1]} : vector<8x65xf32> to vector<8x1xf32>
    "tpu.trace_start"() <{level = 10 : i32, message = "of,nf->on"}> : () -> ()
    %cst_64 = arith.constant dense<0.000000e+00> : vector<1x8xf32>
    %152 = tpu.matmul %145, %147, %cst_64 {dimension_numbers = #tpu.dot_dimension_numbers<[1], [1], [0], [0], [0, 0, 1, 0], [], []>} : vector<1x32xbf16>, vector<8x32xbf16>, vector<1x8xf32> -> vector<1x8xf32>
    "tpu.trace_stop"() : () -> ()
    %153 = vector.broadcast %151 : vector<8x1xf32> to vector<8x8xf32>
    %154 = vector.broadcast %152 : vector<1x8xf32> to vector<8x8xf32>
    %155 = arith.addf %153, %154 : vector<8x8xf32>
    %cst_65 = arith.constant 0.000000e+00 : f32
    %156 = vector.broadcast %cst_65 : f32 to vector<8x8xf32>
    %157 = arith.cmpf oge, %155, %156 : vector<8x8xf32>
    %cst_66 = arith.constant 2.000000e-01 : f32
    %158 = vector.broadcast %cst_66 : f32 to vector<8x8xf32>
    %159 = arith.mulf %158, %155 : vector<8x8xf32>
    %160 = arith.select %157, %155, %159 : vector<8x8xi1>, vector<8x8xf32>
    %c0_67 = arith.constant 0 : index
    %c0_68 = arith.constant 0 : index
    %c0_69 = arith.constant 0 : index
    %161 = vector.load %arg2[%c0_67, %c0_68, %c0_69] : memref<1x8x8xi8, #tpu.memory_space<vmem>>, vector<1x8x8xi8>
    %162 = vector.shape_cast %161 : vector<1x8x8xi8> to vector<8x8xi8>
    %163 = arith.sitofp %162 : vector<8x8xi8> to vector<8x8xf32>
    %cst_70 = arith.constant 0.000000e+00 : f32
    %164 = vector.broadcast %cst_70 : f32 to vector<8x8xf32>
    %165 = arith.cmpf ogt, %163, %164 : vector<8x8xf32>
    %cst_71 = arith.constant -1.000000e+30 : f32
    %166 = vector.broadcast %cst_71 : f32 to vector<8x8xf32>
    %167 = arith.select %165, %160, %166 : vector<8x8xi1>, vector<8x8xf32>
    %cst_72 = arith.constant dense<0xFF800000> : vector<8xf32>
    %168 = vector.multi_reduction <maximumf>, %167, %cst_72 [1] : vector<8x8xf32> to vector<8xf32>
    %169 = vector.shape_cast %168 : vector<8xf32> to vector<8x1xf32>
    %170 = vector.broadcast %169 : vector<8x1xf32> to vector<8x8xf32>
    %171 = arith.subf %167, %170 : vector<8x8xf32>
    %172 = math.exp %171 : vector<8x8xf32>
    %cst_73 = arith.constant dense<0.000000e+00> : vector<8xf32>
    %173 = vector.multi_reduction <add>, %172, %cst_73 [1] : vector<8x8xf32> to vector<8xf32>
    %174 = vector.shape_cast %173 : vector<8xf32> to vector<8x1xf32>
    %175 = tpu.reciprocal %174 {approx = true} : vector<8x1xf32> -> vector<8x1xf32>
    %176 = vector.broadcast %175 : vector<8x1xf32> to vector<8x8xf32>
    %177 = arith.mulf %172, %176 : vector<8x8xf32>
    %178 = arith.truncf %177 : vector<8x8xf32> to vector<8x8xbf16>
    %179 = arith.truncf %149 : vector<8x32xf32> to vector<8x32xbf16>
    %cst_74 = arith.constant dense<0.000000e+00> : vector<8x32xf32>
    %180 = tpu.matmul %178, %179, %cst_74 {dimension_numbers = #tpu.dot_dimension_numbers<[1], [0], [0], [1], [0, 0, 1, 1], [], []>} : vector<8x8xbf16>, vector<8x32xbf16>, vector<8x32xf32> -> vector<8x32xf32>
    %181 = arith.addf %180, %150 : vector<8x32xf32>
    %182 = vector.broadcast %146 : vector<1x32xf32> to vector<8x32xf32>
    %183 = arith.addf %181, %182 : vector<8x32xf32>
    %c0_75 = arith.constant 0 : index
    %c0_76 = arith.constant 0 : index
    %c93 = arith.constant 93 : index
    %184 = vector.load %arg1[%c0_75, %c0_76, %c93] : memref<1x8x95xf32, #tpu.memory_space<vmem>>, vector<1x8x1xf32>
    %185 = vector.shape_cast %184 : vector<1x8x1xf32> to vector<8x1xf32>
    %c0_77 = arith.constant 0 : index
    %c0_78 = arith.constant 0 : index
    %c94 = arith.constant 94 : index
    %186 = vector.load %arg1[%c0_77, %c0_78, %c94] : memref<1x8x95xf32, #tpu.memory_space<vmem>>, vector<1x8x1xf32>
    %187 = vector.shape_cast %186 : vector<1x8x1xf32> to vector<8x1xf32>
    %188 = vector.broadcast %185 : vector<8x1xf32> to vector<8x32xf32>
    %189 = arith.mulf %188, %183 : vector<8x32xf32>
    %cst_79 = arith.constant 1.000000e+00 : f32
    %190 = vector.broadcast %cst_79 : f32 to vector<8x1xf32>
    %191 = arith.subf %187, %190 : vector<8x1xf32>
    %cst_80 = arith.constant 1.000000e+30 : f32
    %192 = vector.broadcast %cst_80 : f32 to vector<8x1xf32>
    %193 = arith.mulf %191, %192 : vector<8x1xf32>
    %194 = vector.broadcast %193 : vector<8x1xf32> to vector<8x32xf32>
    %195 = arith.addf %189, %194 : vector<8x32xf32>
    %cst_81 = arith.constant dense<0xFF800000> : vector<32xf32>
    %196 = vector.multi_reduction <maximumf>, %195, %cst_81 [0] : vector<8x32xf32> to vector<32xf32>
    %197 = vector.shape_cast %196 : vector<32xf32> to vector<1x32xf32>
    %cst_82 = arith.constant 0.000000e+00 : f32
    %198 = vector.broadcast %cst_82 : f32 to vector<1x32xf32>
    %199 = arith.cmpf oge, %197, %198 : vector<1x32xf32>
    %cst_83 = arith.constant 0.00999999977 : f32
    %200 = vector.broadcast %cst_83 : f32 to vector<1x32xf32>
    %201 = arith.mulf %200, %197 : vector<1x32xf32>
    %202 = arith.select %199, %197, %201 : vector<1x32xi1>, vector<1x32xf32>
    %c8 = arith.constant 8 : index
    %c0_84 = arith.constant 0 : index
    %203 = vector.load %arg5[%c8, %c0_84] : memref<41x128xf32, #tpu.memory_space<vmem>>, vector<32x128xf32>
    %204 = arith.truncf %203 : vector<32x128xf32> to vector<32x128xbf16>
    %c40 = arith.constant 40 : index
    %c0_85 = arith.constant 0 : index
    %205 = vector.load %arg5[%c40, %c0_85] : memref<41x128xf32, #tpu.memory_space<vmem>>, vector<1x128xf32>
    %206 = arith.truncf %202 : vector<1x32xf32> to vector<1x32xbf16>
    %cst_86 = arith.constant dense<0.000000e+00> : vector<1x128xf32>
    %207 = tpu.matmul %206, %204, %cst_86 {dimension_numbers = #tpu.dot_dimension_numbers<[1], [0], [0], [1], [0, 0, 1, 1], [], []>} : vector<1x32xbf16>, vector<32x128xbf16>, vector<1x128xf32> -> vector<1x128xf32>
    %208 = arith.addf %207, %205 : vector<1x128xf32>
    %c0_87 = arith.constant 0 : index
    %c0_88 = arith.constant 0 : index
    %c0_89 = arith.constant 0 : index
    %209 = vector.load %arg6[%c0_87, %c0_88, %c0_89] : memref<1x1x128xf32, #tpu.memory_space<vmem>>, vector<1x1x128xf32>
    %210 = vector.shape_cast %209 : vector<1x1x128xf32> to vector<1x128xf32>
    %211 = vector.shape_cast %208 : vector<1x128xf32> to vector<1x1x128xf32>
    tpu.vector_store %arg6[%c0_87, %c0_88, %c0_89], %211 {strides = array<i32>} : memref<1x1x128xf32, #tpu.memory_space<vmem>>, vector<1x1x128xf32>,
    return
  }
  func.func @transform_0(%arg0: i32) -> (i32, i32, i32) {
    %c0_i32 = arith.constant 0 : i32
    %c0_i32_0 = arith.constant 0 : i32
    %c0_i32_1 = arith.constant 0 : i32
    return %arg0, %c0_i32, %c0_i32_0 : i32, i32, i32
  }
  func.func @transform_1(%arg0: i32) -> (i32, i32, i32) {
    %c0_i32 = arith.constant 0 : i32
    %c0_i32_0 = arith.constant 0 : i32
    %c0_i32_1 = arith.constant 0 : i32
    return %arg0, %c0_i32, %c0_i32_0 : i32, i32, i32
  }
  func.func @transform_2(%arg0: i32) -> (i32, i32) {
    %c0_i32 = arith.constant 0 : i32
    %c0_i32_0 = arith.constant 0 : i32
    %c0_i32_1 = arith.constant 0 : i32
    return %c0_i32, %c0_i32_0 : i32, i32
  }
  func.func @transform_3(%arg0: i32) -> (i32, i32, i32) {
    %c0_i32 = arith.constant 0 : i32
    %c0_i32_0 = arith.constant 0 : i32
    %c0_i32_1 = arith.constant 0 : i32
    %c0_i32_2 = arith.constant 0 : i32
    return %c0_i32, %c0_i32_0, %c0_i32_1 : i32, i32, i32
  }
  func.func @transform_4(%arg0: i32) -> (i32, i32) {
    %c0_i32 = arith.constant 0 : i32
    %c0_i32_0 = arith.constant 0 : i32
    %c0_i32_1 = arith.constant 0 : i32
    return %c0_i32, %c0_i32_0 : i32, i32
  }
  func.func @transform_5(%arg0: i32) -> (i32, i32, i32) {
    %c0_i32 = arith.constant 0 : i32
    %c0_i32_0 = arith.constant 0 : i32
    %c0_i32_1 = arith.constant 0 : i32
    return %arg0, %c0_i32, %c0_i32_0 : i32, i32, i32
  }
}

</mosaic_0001>

<llo_original>
// kernel: _lambda_.1
$region0: #{_lambda_.1}
  #allocation0 [shape = 'u32[]', space=smem, size = 0x4, offset = 0x4, fixed_abs, tag = 'smem constant byte address 0x4 - core index']
  #allocation1 [shape = 'u32[144,128]{1,0:T(1,128)}', space=vmem, size = 0x12000, scoped, tag = 'internal scratch']
  %s0 = inlined_call_operand.vmem [shape: f32[2,8,95], index: 0, kind: input, shape index: {}]
  %s1 = inlined_call_operand.vmem [shape: s8[2,8,8], index: 1, kind: input, shape index: {}]
  %s2 = inlined_call_operand.vmem [shape: bf16[95,65], index: 2, kind: input, shape index: {}]
  %s3 = inlined_call_operand.vmem [shape: bf16[3,32,65], index: 3, kind: input, shape index: {}]
  %s4 = inlined_call_operand.hbm [shape: f32[41,128], index: 4, kind: input, shape index: {}]
  %s5 = inlined_call_operand.hbm [shape: f32[2,1,128], index: 5, kind: output, shape index: {}]
  %s6 = sld [smem:[#allocation0]]
  $region57: #{_lambda_.1} parent=0
    _
  %s8 = ssub.s32 1, %s6
  %s9 = scalar_select 0, %s8, %s6
  $region1: #{_lambda_.1} parent=0
    #allocation2 [shape = 'u8[24576]{0}', space=vmem, size = 0x6000, scoped, tag = 'input window, operand 4, single buffered']
    #allocation3 [shape = 's32[2]{0}', space=sflag, size = 0x8, scoped, tag = 'scoped memory for _lambda_.1']
    #allocation4 [shape = 's32[2]{0}', space=sflag, size = 0x8, scoped, tag = 'scoped memory for _lambda_.1']
    #allocation5 [shape = 'u8[1024]{0}', space=vmem, size = 0x400, scoped, tag = 'output window, operand 0']
    %10 = vsyncpa [#allocation3], 0
    %11 = vsyncpa [#allocation4], 0
    %s12 = scalar_lea.sflag [#allocation4], 1
    %13 = vsyncpa %s12, 0
    loop: start=0, step=1, limit=4
    $region2: #{_lambda_.1} parent=1 // loop_pre_header
      _
    $region3: #{_lambda_.1} parent=1 // loop_header
      %s15 = sphi 0, %s19
      %p16 = scmp.ge.s32.totalorder %s15, 4
      %s25 = sphi 0, %s27
      %s28 = sphi 0, %s25
      %s29 = sphi 0, %s28
      %s45 = sphi 0, %s29
      %s51 = sphi 0, %s53
      %s54 = sphi 0, %s51
      %s55 = sphi 0, %s54
      %s71 = sphi 0, %s55
      %s75 = sphi 0, %s75
      %s77 = sphi 0, %s75
      %s78 = sphi 0, %s77
      %s92 = sphi 0, %s78
      %s96 = sphi 0, %s96
      %s98 = sphi 0, %s96
      %s99 = sphi 0, %s98
      %s113 = sphi 0, %s99
      %s117 = sphi 0, %s117
      %s119 = sphi 0, %s117
      %s120 = sphi 0, %s119
      %s134 = sphi 0, %s120
      %s140 = sphi 0, %s142
      %s143 = sphi 0, %s140
      %s144 = sphi 0, %s143
      %s160 = sphi 0, %s144
    $region4: #{_lambda_.1} parent=1 // loop_header_branch
      %18 = sbr.rel (%p16) target = $region8
    $region5: #{_lambda_.1} parent=1 // loop_body
      %s20 = ssub.s32 %s15, 1
      %s21 = ssub.s32 %s15, 2
      %s22 = sadd.s32 %s15, 1
      %s23 = ssub.s32 %s15, %s22
      %p24 = scmp.eq.s32.totalorder %s23, 0
      %s26 = sadd.s32 %s25, 1
      %s27 = scalar_select %p24, %s25, %s26
      %p30 = pneg %p24
      %p31 = scmp.eq.s32.totalorder %s15, 1
      %p32 = por %p30, %p31
      %p33 = scmp.ne.s32.totalorder %s25, %s28
      %p34 = scmp.eq.s32.totalorder %s15, 0
      %p35 = por %p33, %p34
      %p36 = scmp.ne.s32.totalorder %s25, %s28
      %p37 = scmp.eq.s32.totalorder %s20, 1
      %p38 = por %p36, %p37
      %p39 = scmp.ne.s32.totalorder %s28, %s29
      %p40 = scmp.eq.s32.totalorder %s20, 0
      %p41 = por %p39, %p40
      %p42 = scmp.ne.s32.totalorder %s28, %s29
      %p43 = scmp.eq.s32.totalorder %s21, 1
      %p44 = por %p42, %p43
      %p46 = scmp.ne.s32.totalorder %s29, %s45
      %p47 = scmp.eq.s32.totalorder %s21, 0
      %p48 = por %p46, %p47
      %s49 = ssub.s32 %s15, %s22
      %p50 = scmp.eq.s32.totalorder %s49, 0
      %s52 = sadd.s32 %s51, 1
      %s53 = scalar_select %p50, %s51, %s52
      %p56 = pneg %p50
      %p57 = scmp.eq.s32.totalorder %s15, 1
      %p58 = por %p56, %p57
      %p59 = scmp.ne.s32.totalorder %s51, %s54
      %p60 = scmp.eq.s32.totalorder %s15, 0
      %p61 = por %p59, %p60
      %p62 = scmp.ne.s32.totalorder %s51, %s54
      %p63 = scmp.eq.s32.totalorder %s20, 1
      %p64 = por %p62, %p63
      %p65 = scmp.ne.s32.totalorder %s54, %s55
      %p66 = scmp.eq.s32.totalorder %s20, 0
      %p67 = por %p65, %p66
      %p68 = scmp.ne.s32.totalorder %s54, %s55
      %p69 = scmp.eq.s32.totalorder %s21, 1
      %p70 = por %p68, %p69
      %p72 = scmp.ne.s32.totalorder %s55, %s71
      %p73 = scmp.eq.s32.totalorder %s21, 0
      %p74 = por %p72, %p73
      %s76 = sadd.s32 %s75, 1
      %p79 = scmp.eq.s32.totalorder %s15, 1
      %p80 = scmp.ne.s32.totalorder %s75, %s77
      %p81 = scmp.eq.s32.totalorder %s15, 0
      %p82 = por %p80, %p81
      %p83 = scmp.ne.s32.totalorder %s75, %s77
      %p84 = scmp.eq.s32.totalorder %s20, 1
      %p85 = por %p83, %p84
      %p86 = scmp.ne.s32.totalorder %s77, %s78
      %p87 = scmp.eq.s32.totalorder %s20, 0
      %p88 = por %p86, %p87
      %p89 = scmp.ne.s32.totalorder %s77, %s78
      %p90 = scmp.eq.s32.totalorder %s21, 1
      %p91 = por %p89, %p90
      %p93 = scmp.ne.s32.totalorder %s78, %s92
      %p94 = scmp.eq.s32.totalorder %s21, 0
      %p95 = por %p93, %p94
      %s97 = sadd.s32 %s96, 1
      %p100 = scmp.eq.s32.totalorder %s15, 1
      %p101 = scmp.ne.s32.totalorder %s96, %s98
      %p102 = scmp.eq.s32.totalorder %s15, 0
      %p103 = por %p101, %p102
      %p104 = scmp.ne.s32.totalorder %s96, %s98
      %p105 = scmp.eq.s32.totalorder %s20, 1
      %p106 = por %p104, %p105
      %p107 = scmp.ne.s32.totalorder %s98, %s99
      %p108 = scmp.eq.s32.totalorder %s20, 0
      %p109 = por %p107, %p108
      %p110 = scmp.ne.s32.totalorder %s98, %s99
      %p111 = scmp.eq.s32.totalorder %s21, 1
      %p112 = por %p110, %p111
      %p114 = scmp.ne.s32.totalorder %s99, %s113
      %p115 = scmp.eq.s32.totalorder %s21, 0
      %p116 = por %p114, %p115
      %s118 = sadd.s32 %s117, 1
      %p121 = scmp.eq.s32.totalorder %s15, 1
      %p122 = scmp.ne.s32.totalorder %s117, %s119
      %p123 = scmp.eq.s32.totalorder %s15, 0
      %p124 = por %p122, %p123
      %p125 = scmp.ne.s32.totalorder %s117, %s119
      %p126 = scmp.eq.s32.totalorder %s20, 1
      %p127 = por %p125, %p126
      %p128 = scmp.ne.s32.totalorder %s119, %s120
      %p129 = scmp.eq.s32.totalorder %s20, 0
      %p130 = por %p128, %p129
      %p131 = scmp.ne.s32.totalorder %s119, %s120
      %p132 = scmp.eq.s32.totalorder %s21, 1
      %p133 = por %p131, %p132
      %p135 = scmp.ne.s32.totalorder %s120, %s134
      %p136 = scmp.eq.s32.totalorder %s21, 0
      %p137 = por %p135, %p136
      %s138 = ssub.s32 %s15, %s22
      %p139 = scmp.eq.s32.totalorder %s138, 0
      %s141 = sadd.s32 %s140, 1
      %s142 = scalar_select %p139, %s140, %s141
      %p145 = pneg %p139
      %p146 = scmp.eq.s32.totalorder %s15, 1
      %p147 = por %p145, %p146
      %p148 = scmp.ne.s32.totalorder %s140, %s143
      %p149 = scmp.eq.s32.totalorder %s15, 0
      %p150 = por %p148, %p149
      %p151 = scmp.ne.s32.totalorder %s140, %s143
      %p152 = scmp.eq.s32.totalorder %s20, 1
      %p153 = por %p151, %p152
      %p154 = scmp.ne.s32.totalorder %s143, %s144
      %p155 = scmp.eq.s32.totalorder %s20, 0
      %p156 = por %p154, %p155
      %p157 = scmp.ne.s32.totalorder %s143, %s144
      %p158 = scmp.eq.s32.totalorder %s21, 1
      %p159 = por %p157, %p158
      %p161 = scmp.ne.s32.totalorder %s144, %s160
      %p162 = scmp.eq.s32.totalorder %s21, 0
      %p163 = por %p161, %p162
      %p164 = scmp.le.s32.totalorder 1, %s15
      %p165 = scmp.lt.s32.totalorder %s15, 3
      %p166 = pnand %p164, %p165
      %p167 = pneg %p166
      // Predicated region
      $region9: #{_lambda_.1} parent=5 // pred_check
        _
      $region10: #{_lambda_.1} parent=5 // pred_check_branch
        %169 = sbr.rel (%p166) target = $region12
      $region11: #{_lambda_.1} parent=5 // pred_region
        %s170 = ssub.s32 %s15, 1
        // Predicated region
        $region13: #{_lambda_.1} parent=11 // pred_check
          %p171 = pneg %p88
        $region14: #{_lambda_.1} parent=11 // pred_check_branch
          %173 = sbr.rel (%p171) target = $region16
        $region15: #{_lambda_.1} parent=11 // pred_region
          _
        $region16: #{_lambda_.1} parent=11 // pred_fallthru
          _
        // Predicated region
        $region17: #{_lambda_.1} parent=11 // pred_check
          %p174 = pneg %p109
        $region18: #{_lambda_.1} parent=11 // pred_check_branch
          %176 = sbr.rel (%p174) target = $region20
        $region19: #{_lambda_.1} parent=11 // pred_region
          _
        $region20: #{_lambda_.1} parent=11 // pred_fallthru
          _
        // Predicated region
        $region21: #{_lambda_.1} parent=11 // pred_check
          %p177 = pneg %p130
        $region22: #{_lambda_.1} parent=11 // pred_check_branch
          %179 = sbr.rel (%p177) target = $region24
        $region23: #{_lambda_.1} parent=11 // pred_region
          %s181 = ssub.s32 768, 768
          %182 = vsyncadd [#allocation3], %s181
          %s183 = sshll.u32 [#allocation2], 4
          %s184 = int_to_ptr.vmem [resolvable:$true] %s183
          %189 = dma.hbm_to_vmem [thread:$0]  %s4, 768, %s184, [#allocation3], 128, 128, 8
        $region24: #{_lambda_.1} parent=11 // pred_fallthru
          _
      $region12: #{_lambda_.1} parent=5 // pred_fallthru
        _
      %p190 = scmp.lt.s32.totalorder %s15, 2
      // Predicated region
      $region25: #{_lambda_.1} parent=5 // pred_check
        %p191 = pneg %p190
      $region26: #{_lambda_.1} parent=5 // pred_check_branch
        %193 = sbr.rel (%p191) target = $region28
      $region27: #{_lambda_.1} parent=5 // pred_region
        // Predicated region
        $region29: #{_lambda_.1} parent=27 // pred_check
          %p194 = pneg %p35
        $region30: #{_lambda_.1} parent=27 // pred_check_branch
          %196 = sbr.rel (%p194) target = $region32
        $region31: #{_lambda_.1} parent=27 // pred_region
          %p197 = scmp.lt.s32.totalorder %s15, 1
          %s198 = scalar_select %p197, %s15, 1
          %s199 = smul.addr %s198, 8
          %s200 = scalar_lea.vmem %s0, %s199
        $region32: #{_lambda_.1} parent=27 // pred_fallthru
          _
        // Predicated region
        $region33: #{_lambda_.1} parent=27 // pred_check
          %p201 = pneg %p61
        $region34: #{_lambda_.1} parent=27 // pred_check_branch
          %203 = sbr.rel (%p201) target = $region36
        $region35: #{_lambda_.1} parent=27 // pred_region
          %p204 = scmp.lt.s32.totalorder %s15, 1
          %s205 = scalar_select %p204, %s15, 1
          %s206 = smul.addr %s205, 2
          %s207 = scalar_lea.vmem %s1, %s206
        $region36: #{_lambda_.1} parent=27 // pred_fallthru
          _
      $region28: #{_lambda_.1} parent=5 // pred_fallthru
        _
      %p208 = scmp.le.s32.totalorder 1, %s15
      %p209 = scmp.lt.s32.totalorder %s15, 3
      %p210 = pnand %p208, %p209
      %p211 = pneg %p210
      // Predicated region
      $region37: #{_lambda_.1} parent=5 // pred_check
        _
      $region38: #{_lambda_.1} parent=5 // pred_check_branch
        %213 = sbr.rel (%p210) target = $region40
      $region39: #{_lambda_.1} parent=5 // pred_region
        %s214 = ssub.s32 %s15, 1
        // Predicated region
        $region41: #{_lambda_.1} parent=39 // pred_check
          %p215 = pneg %p130
        $region42: #{_lambda_.1} parent=39 // pred_check_branch
          %217 = sbr.rel (%p215) target = $region44
        $region43: #{_lambda_.1} parent=39 // pred_region
          %218 = dma.done [#allocation3], 768
        $region44: #{_lambda_.1} parent=39 // pred_fallthru
          _
        %p219 = scmp.lt.s32.totalorder %s20, 1
        %s220 = scalar_select %p219, %s20, 1
        %s221 = smul.addr %s220, 8
        %s222 = scalar_lea.vmem %s0, %s221
        %p223 = pneg %p41
        %p224 = pneg %p38
        %p225 = scmp.lt.s32.totalorder %s20, 1
        %s226 = scalar_select %p225, %s20, 1
        %s227 = smul.addr %s226, 2
        %s228 = scalar_lea.vmem %s1, %s227
        %p229 = pneg %p67
        %p230 = pneg %p64
        %p231 = pneg %p88
        %p232 = pneg %p85
        %p233 = pneg %p109
        %p234 = pneg %p106
        %p235 = pneg %p130
        %p236 = pneg %p127
        %p237 = pneg %p156
        %p238 = pneg %p153
        %s239 = sand.u32 %s143, 1
        %s240 = scalar_lea.sflag [#allocation4], %s239
        %s241 = sand.u32 %s143, 1
        %s242 = scalar_lea.vmem [#allocation5], %s241
        %p243 = scmp.lt.s32.totalorder %s20, 1
        %s244 = scalar_select %p243, %s20, 1
        %s245 = smul.addr %s244, 8
        %s246 = scalar_lea.vmem %s0, %s245
        %p247 = scmp.lt.s32.totalorder %s20, 1
        %s248 = scalar_select %p247, %s20, 1
        %s249 = smul.addr %s248, 2
        %s250 = scalar_lea.vmem %s1, %s249
        %v252 = vld [vmem:[%s246] sm:$0xff]
        %v253 = vld [vmem:[%s2] sm:$0xf]
        %v254 = vld [vmem:[%s2 + $0x4] sm:$0xf]
        %v255 = vld [vmem:[%s2 + $0x8] sm:$0xf]
        %v256 = vld [vmem:[%s2 + $0xc] sm:$0xf]
        %v257 = vld [vmem:[%s2 + $0x10] sm:$0xf]
        %v258 = vld [vmem:[%s2 + $0x14] sm:$0xf]
        %v259 = vld [vmem:[%s2 + $0x18] sm:$0xf]
        %v260 = vld [vmem:[%s2 + $0x1c] sm:$0xf]
        %v261 = vld [vmem:[%s2 + $0x20] sm:$0xf]
        %v262 = vld [vmem:[%s2 + $0x24] sm:$0xf]
        %v263 = vld [vmem:[%s2 + $0x28] sm:$0xf]
        %v264 = vld [vmem:[%s2 + $0x2c] sm:$0xf]
        %v265 = vld [vmem:[#allocation2] sm:$0x1]
        %v266 = vpack.c.bf16 %v265, %v265
        %v267 = vld [vmem:[#allocation2 + $0x4] sm:$0x1]
        %v268 = vpack.c.bf16 %v252, %v252
        %v281 = vunpack.c.l.b16 %v253
        %v282 = vunpack.c.l.b16 %v254
        %v283 = vunpack.c.l.b16 %v255
        %v284 = vunpack.c.l.b16 %v256
        %v285 = vunpack.c.l.b16 %v257
        %v286 = vunpack.c.l.b16 %v258
        %v287 = vunpack.c.l.b16 %v259
        %v288 = vunpack.c.l.b16 %v260
        %v289 = vunpack.c.l.b16 %v261
        %v290 = vunpack.c.l.b16 %v262
        %v291 = vunpack.c.l.b16 %v263
        %v292 = vunpack.c.l.b16 %v264
        %v293 = vpack.c.b16 %v282, %v281
        %v294 = vpack.c.b16 %v284, %v283
        %v295 = vpack.c.b16 %v286, %v285
        %v296 = vpack.c.b16 %v288, %v287
        %v297 = vpack.c.b16 %v290, %v289
        %v298 = vpack.c.b16 %v292, %v291
        %vm304 = vcmask 777216
        %v306 = vsel %vm304, %v268, 0
        %vm308 = vcmask 1046528
        %vm309 = vcmask 1047552
        %v310 = vsel %vm308, 4294967295, 65535
        %v311 = vsel %vm309, %v310, 0
        %v313 = vand.u32 %v298, %v311
        %315 = vmatprep.subr.bf16.mxu0 0
        %316 = vmatpush1.bf16.msra.mxu0 %v293
        %317 = vmatprep.subr.bf16.mxu0 0
        %318 = vmatpush1.bf16.msra.mxu0 %v294
        %319 = vmatprep.subr.bf16.mxu0 0
        %320 = vmatpush1.bf16.msra.mxu0 %v295
        %321 = vmatprep.subr.bf16.mxu0 0
        %322 = vmatpush1.bf16.msra.mxu0 %v296
        %323 = vmatprep.subr.bf16.mxu0 0
        %324 = vmatpush1.bf16.msra.mxu0 %v297
        %325 = vmatprep.subr.bf16.mxu0 0
        %326 = vmatpush1.bf16.msra.mxu0 %v313
        %327 = vmatprep.subr.bf16.mxu0 0
        %328 = vmatpush1.bf16.msra.mxu0 0
        %329 = vmatprep.subr.bf16.mxu0 0
        %330 = vmatpush1.bf16.msra.mxu0 0
        %331 = vmatprep.subr.bf16.mxu0 0
        %332 = vmatpush1.bf16.msra.mxu0 0
        %333 = vmatprep.subr.bf16.mxu0 0
        %334 = vmatpush1.bf16.msra.mxu0 0
        %335 = vmatprep.subr.bf16.mxu0 0
        %336 = vmatpush1.bf16.msra.mxu0 0
        %337 = vmatprep.subr.bf16.mxu0 0
        %338 = vmatpush1.bf16.msra.mxu0 0
        %339 = vmatprep.subr.bf16.mxu0 0
        %340 = vmatpush1.bf16.msra.mxu0 0
        %341 = vmatprep.subr.bf16.mxu0 0
        %342 = vmatpush1.bf16.msra.mxu0 0
        %343 = vmatprep.subr.bf16.mxu0 0
        %344 = vmatpush1.bf16.msra.mxu0 0
        %345 = vmatprep.subr.bf16.mxu0 0
        %346 = vmatpush1.bf16.msra.mxu0 0
        %347 = vmatprep.mubr.bf16.mxu0 0
        %348 = vmatmul.mubr.bf16.gmra.mrb[0].mxu0 %v306
        %v349 = vpop.f32.mrb[0].mxu0
        %v350 = vadd.f32 0.0, %v349
        %v351 = vpop.f32.mrb[0].mxu0
        %v352 = vpop.f32.mrb[0].mxu0
        %v353 = vpop.f32.mrb[0].mxu0
        %354 = vdwg.mxu0
        %v356 = vsel %vm304, %v266, 0
        %358 = vmatprep.subr.bf16.mxu0 0
        %359 = vmatpush1.bf16.xpose.msra.mxu0 %v306
        %360 = vmatprep.subr.bf16.mxu0 0
        %361 = vmatpush1.bf16.xpose.msra.mxu0 0
        %362 = vmatprep.subr.bf16.mxu0 0
        %363 = vmatpush1.bf16.xpose.msra.mxu0 0
        %364 = vmatprep.subr.bf16.mxu0 0
        %365 = vmatpush1.bf16.xpose.msra.mxu0 0
        %366 = vmatprep.subr.bf16.mxu0 0
        %367 = vmatpush1.bf16.xpose.msra.mxu0 0
        %368 = vmatprep.subr.bf16.mxu0 0
        %369 = vmatpush1.bf16.xpose.msra.mxu0 0
        %370 = vmatprep.subr.bf16.mxu0 0
        %371 = vmatpush1.bf16.xpose.msra.mxu0 0
        %372 = vmatprep.subr.bf16.mxu0 0
        %373 = vmatpush1.bf16.xpose.msra.mxu0 0
        %374 = vmatprep.subr.bf16.mxu0 0
        %375 = vmatpush1.bf16.xpose.msra.mxu0 0
        %376 = vmatprep.subr.bf16.mxu0 0
        %377 = vmatpush1.bf16.xpose.msra.mxu0 0
        %378 = vmatprep.subr.bf16.mxu0 0
        %379 = vmatpush1.bf16.xpose.msra.mxu0 0
        %380 = vmatprep.subr.bf16.mxu0 0
        %381 = vmatpush1.bf16.xpose.msra.mxu0 0
        %382 = vmatprep.subr.bf16.mxu0 0
        %383 = vmatpush1.bf16.xpose.msra.mxu0 0
        %384 = vmatprep.subr.bf16.mxu0 0
        %385 = vmatpush1.bf16.xpose.msra.mxu0 0
        %386 = vmatprep.subr.bf16.mxu0 0
        %387 = vmatpush1.bf16.xpose.msra.mxu0 0
        %388 = vmatprep.subr.bf16.mxu0 0
        %389 = vmatpush1.bf16.xpose.msra.mxu0 0
        %390 = vmatprep.mubr.bf16.mxu0 0
        %391 = vmatmul.mubr.bf16.gmra.mrb[0].mxu0 %v356
        %v392 = vpop.f32.mrb[0].mxu0
        %v393 = vadd.f32 0.0, %v392
        %v394 = vpop.f32.mrb[0].mxu0
        %v395 = vpop.f32.mrb[0].mxu0
        %v396 = vpop.f32.mrb[0].mxu0
        %397 = vdwg.mxu0
        %399 = vset.pattern.permute.xlu0 64
        %400 = vperm.xlu0 %399, %v350
        %v401 = vpop.permute.xlu0 %400
        %v403 = vlaneseq
        %v404 = vshrl.u32 %v403, 7
        %v405 = vsub.s32 0, %v404
        %v406 = vrot.slane %v393, %v405
        %v407 = vadd.f32 %v401, %v406
        %vm408 = vcmp.ge.f32.partialorder %v407, 0.0
        %v409 = vmul.f32 %v407, 0.2
        %v410 = vsel %vm408, %v407, %v409
        %v411 = vld [vmem:[%s250] sm:$0x3]
        %v412 = vunpack.c.0.s8 %v411
        %v413 = vcvt.s32.f32 %v412
        %vm414 = vcmp.gt.f32.partialorder %v413, 0.0
        %v415 = vsel %vm414, %v410, -1e+30
        %vm416 = vcmask 64512
        %v417 = vsel %vm416, %v415, -inf
        %418 = vmax.xlane.f32.xlu0 %v417
        %v419 = vpop.xlane.xlu0 %418
        %v420 = vsub.f32 %v415, %v419
        %v421 = vmul.f32 %v420, 1.442695
        %v422 = vpow.pop %v421
        %v423 = vsel %vm416, %v422, 0.0
        %424 = vadd.xlane.f32.xlu0 %v423
        %v425 = vpop.xlane.xlu0 %424
        %v426 = vrcp.pop %v425
        %v427 = vmul.f32 %v422, %v426
        %v428 = vpack.c.bf16 %v427, %v427
        %v429 = vpack.c.bf16 %v350, %v350
        %430 = vrot.lane.b32.xlu0 %v350, 96
        %v431 = vpop.permute.xlu0 %430
        %v434 = vsel %vm416, %v428, 0
        %vm436 = vcmask 1043456
        %v438 = vsel %vm436, %v429, 0
        %440 = vmatprep.subr.bf16.mxu0 0
        %441 = vmatpush1.bf16.msra.mxu0 %v438
        %442 = vmatprep.subr.bf16.mxu0 0
        %443 = vmatpush1.bf16.msra.mxu0 0
        %444 = vmatprep.subr.bf16.mxu0 0
        %445 = vmatpush1.bf16.msra.mxu0 0
        %446 = vmatprep.subr.bf16.mxu0 0
        %447 = vmatpush1.bf16.msra.mxu0 0
        %448 = vmatprep.subr.bf16.mxu0 0
        %449 = vmatpush1.bf16.msra.mxu0 0
        %450 = vmatprep.subr.bf16.mxu0 0
        %451 = vmatpush1.bf16.msra.mxu0 0
        %452 = vmatprep.subr.bf16.mxu0 0
        %453 = vmatpush1.bf16.msra.mxu0 0
        %454 = vmatprep.subr.bf16.mxu0 0
        %455 = vmatpush1.bf16.msra.mxu0 0
        %456 = vmatprep.subr.bf16.mxu0 0
        %457 = vmatpush1.bf16.msra.mxu0 0
        %458 = vmatprep.subr.bf16.mxu0 0
        %459 = vmatpush1.bf16.msra.mxu0 0
        %460 = vmatprep.subr.bf16.mxu0 0
        %461 = vmatpush1.bf16.msra.mxu0 0
        %462 = vmatprep.subr.bf16.mxu0 0
        %463 = vmatpush1.bf16.msra.mxu0 0
        %464 = vmatprep.subr.bf16.mxu0 0
        %465 = vmatpush1.bf16.msra.mxu0 0
        %466 = vmatprep.subr.bf16.mxu0 0
        %467 = vmatpush1.bf16.msra.mxu0 0
        %468 = vmatprep.subr.bf16.mxu0 0
        %469 = vmatpush1.bf16.msra.mxu0 0
        %470 = vmatprep.subr.bf16.mxu0 0
        %471 = vmatpush1.bf16.msra.mxu0 0
        %472 = vmatprep.mubr.bf16.mxu0 0
        %473 = vmatmul.mubr.bf16.gmra.mrb[0].mxu0 %v434
        %v474 = vpop.f32.mrb[0].mxu0
        %v475 = vadd.f32 %v431, %v474
        %v476 = vpop.f32.mrb[0].mxu0
        %v477 = vpop.f32.mrb[0].mxu0
        %v478 = vpop.f32.mrb[0].mxu0
        %479 = vdwg.mxu0
        %v480 = vlaneseq
        %v481 = vshrl.u32 %v480, 7
        %v482 = vsub.s32 0, %v481
        %v483 = vrot.slane %v267, %v482
        %v484 = vadd.f32 %v475, %v483
        %vm485 = vcmp.ge.f32.partialorder %v484, 0.0
        %v486 = vmul.f32 %v484, 0.01
        %v487 = vsel %vm485, %v484, %v486
        %v488 = vld [vmem:[%s3] sm:$0xf]
        %v489 = vld [vmem:[%s3 + $0x4] sm:$0xf]
        %v490 = vld [vmem:[%s3 + $0x8] sm:$0xf]
        %v491 = vld [vmem:[%s3 + $0xc] sm:$0xf]
        %v492 = vld [vmem:[#allocation2 + $0x1] sm:$0x1]
        %v493 = vpack.c.bf16 %v492, %v492
        %v494 = vld [vmem:[#allocation2 + $0x5] sm:$0x1]
        %v495 = vpack.c.bf16 %v487, %v487
        %v500 = vunpack.c.l.b16 %v488
        %v501 = vunpack.c.l.b16 %v489
        %v502 = vunpack.c.l.b16 %v490
        %v503 = vunpack.c.l.b16 %v491
        %v504 = vpack.c.b16 %v501, %v500
        %v505 = vpack.c.b16 %v503, %v502
        %vm508 = vcmask 261120
        %v510 = vsel %vm508, %v495, 0
        %512 = vmatprep.subr.bf16.mxu0 0
        %513 = vmatpush1.bf16.msra.mxu0 %v504
        %514 = vmatprep.subr.bf16.mxu0 0
        %515 = vmatpush1.bf16.msra.mxu0 %v505
        %516 = vmatprep.subr.bf16.mxu0 0
        %517 = vmatpush1.bf16.msra.mxu0 0
        %518 = vmatprep.subr.bf16.mxu0 0
        %519 = vmatpush1.bf16.msra.mxu0 0
        %520 = vmatprep.subr.bf16.mxu0 0
        %521 = vmatpush1.bf16.msra.mxu0 0
        %522 = vmatprep.subr.bf16.mxu0 0
        %523 = vmatpush1.bf16.msra.mxu0 0
        %524 = vmatprep.subr.bf16.mxu0 0
        %525 = vmatpush1.bf16.msra.mxu0 0
        %526 = vmatprep.subr.bf16.mxu0 0
        %527 = vmatpush1.bf16.msra.mxu0 0
        %528 = vmatprep.subr.bf16.mxu0 0
        %529 = vmatpush1.bf16.msra.mxu0 0
        %530 = vmatprep.subr.bf16.mxu0 0
        %531 = vmatpush1.bf16.msra.mxu0 0
        %532 = vmatprep.subr.bf16.mxu0 0
        %533 = vmatpush1.bf16.msra.mxu0 0
        %534 = vmatprep.subr.bf16.mxu0 0
        %535 = vmatpush1.bf16.msra.mxu0 0
        %536 = vmatprep.subr.bf16.mxu0 0
        %537 = vmatpush1.bf16.msra.mxu0 0
        %538 = vmatprep.subr.bf16.mxu0 0
        %539 = vmatpush1.bf16.msra.mxu0 0
        %540 = vmatprep.subr.bf16.mxu0 0
        %541 = vmatpush1.bf16.msra.mxu0 0
        %542 = vmatprep.subr.bf16.mxu0 0
        %543 = vmatpush1.bf16.msra.mxu0 0
        %544 = vmatprep.mubr.bf16.mxu0 0
        %545 = vmatmul.mubr.bf16.gmra.mrb[0].mxu0 %v510
        %v546 = vpop.f32.mrb[0].mxu0
        %v547 = vadd.f32 0.0, %v546
        %v548 = vpop.f32.mrb[0].mxu0
        %v549 = vpop.f32.mrb[0].mxu0
        %v550 = vpop.f32.mrb[0].mxu0
        %551 = vdwg.mxu0
        %v553 = vsel %vm508, %v493, 0
        %555 = vmatprep.subr.bf16.mxu0 0
        %556 = vmatpush1.bf16.xpose.msra.mxu0 %v510
        %557 = vmatprep.subr.bf16.mxu0 0
        %558 = vmatpush1.bf16.xpose.msra.mxu0 0
        %559 = vmatprep.subr.bf16.mxu0 0
        %560 = vmatpush1.bf16.xpose.msra.mxu0 0
        %561 = vmatprep.subr.bf16.mxu0 0
        %562 = vmatpush1.bf16.xpose.msra.mxu0 0
        %563 = vmatprep.subr.bf16.mxu0 0
        %564 = vmatpush1.bf16.xpose.msra.mxu0 0
        %565 = vmatprep.subr.bf16.mxu0 0
        %566 = vmatpush1.bf16.xpose.msra.mxu0 0
        %567 = vmatprep.subr.bf16.mxu0 0
        %568 = vmatpush1.bf16.xpose.msra.mxu0 0
        %569 = vmatprep.subr.bf16.mxu0 0
        %570 = vmatpush1.bf16.xpose.msra.mxu0 0
        %571 = vmatprep.subr.bf16.mxu0 0
        %572 = vmatpush1.bf16.xpose.msra.mxu0 0
        %573 = vmatprep.subr.bf16.mxu0 0
        %574 = vmatpush1.bf16.xpose.msra.mxu0 0
        %575 = vmatprep.subr.bf16.mxu0 0
        %576 = vmatpush1.bf16.xpose.msra.mxu0 0
        %577 = vmatprep.subr.bf16.mxu0 0
        %578 = vmatpush1.bf16.xpose.msra.mxu0 0
        %579 = vmatprep.subr.bf16.mxu0 0
        %580 = vmatpush1.bf16.xpose.msra.mxu0 0
        %581 = vmatprep.subr.bf16.mxu0 0
        %582 = vmatpush1.bf16.xpose.msra.mxu0 0
        %583 = vmatprep.subr.bf16.mxu0 0
        %584 = vmatpush1.bf16.xpose.msra.mxu0 0
        %585 = vmatprep.subr.bf16.mxu0 0
        %586 = vmatpush1.bf16.xpose.msra.mxu0 0
        %587 = vmatprep.mubr.bf16.mxu0 0
        %588 = vmatmul.mubr.bf16.gmra.mrb[0].mxu0 %v553
        %v589 = vpop.f32.mrb[0].mxu0
        %v590 = vadd.f32 0.0, %v589
        %v591 = vpop.f32.mrb[0].mxu0
        %v592 = vpop.f32.mrb[0].mxu0
        %v593 = vpop.f32.mrb[0].mxu0
        %594 = vdwg.mxu0
        %596 = vset.pattern.permute.xlu0 64
        %597 = vperm.xlu0 %596, %v547
        %v598 = vpop.permute.xlu0 %597
        %v600 = vlaneseq
        %v601 = vshrl.u32 %v600, 7
        %v602 = vsub.s32 0, %v601
        %v603 = vrot.slane %v590, %v602
        %v604 = vadd.f32 %v598, %v603
        %vm605 = vcmp.ge.f32.partialorder %v604, 0.0
        %v606 = vmul.f32 %v604, 0.2
        %v607 = vsel %vm605, %v604, %v606
        %v608 = vld [vmem:[%s250] sm:$0x3]
        %v609 = vunpack.c.0.s8 %v608
        %v610 = vcvt.s32.f32 %v609
        %vm611 = vcmp.gt.f32.partialorder %v610, 0.0
        %v612 = vsel %vm611, %v607, -1e+30
        %v613 = vsel %vm416, %v612, -inf
        %614 = vmax.xlane.f32.xlu0 %v613
        %v615 = vpop.xlane.xlu0 %614
        %v616 = vsub.f32 %v612, %v615
        %v617 = vmul.f32 %v616, 1.442695
        %v618 = vpow.pop %v617
        %v619 = vsel %vm416, %v618, 0.0
        %620 = vadd.xlane.f32.xlu0 %v619
        %v621 = vpop.xlane.xlu0 %620
        %v622 = vrcp.pop %v621
        %v623 = vmul.f32 %v618, %v622
        %v624 = vpack.c.bf16 %v623, %v623
        %v625 = vpack.c.bf16 %v547, %v547
        %626 = vrot.lane.b32.xlu0 %v547, 96
        %v627 = vpop.permute.xlu0 %626
        %v630 = vsel %vm416, %v624, 0
        %v633 = vsel %vm436, %v625, 0
        %635 = vmatprep.subr.bf16.mxu0 0
        %636 = vmatpush1.bf16.msra.mxu0 %v633
        %637 = vmatprep.subr.bf16.mxu0 0
        %638 = vmatpush1.bf16.msra.mxu0 0
        %639 = vmatprep.subr.bf16.mxu0 0
        %640 = vmatpush1.bf16.msra.mxu0 0
        %641 = vmatprep.subr.bf16.mxu0 0
        %642 = vmatpush1.bf16.msra.mxu0 0
        %643 = vmatprep.subr.bf16.mxu0 0
        %644 = vmatpush1.bf16.msra.mxu0 0
        %645 = vmatprep.subr.bf16.mxu0 0
        %646 = vmatpush1.bf16.msra.mxu0 0
        %647 = vmatprep.subr.bf16.mxu0 0
        %648 = vmatpush1.bf16.msra.mxu0 0
        %649 = vmatprep.subr.bf16.mxu0 0
        %650 = vmatpush1.bf16.msra.mxu0 0
        %651 = vmatprep.subr.bf16.mxu0 0
        %652 = vmatpush1.bf16.msra.mxu0 0
        %653 = vmatprep.subr.bf16.mxu0 0
        %654 = vmatpush1.bf16.msra.mxu0 0
        %655 = vmatprep.subr.bf16.mxu0 0
        %656 = vmatpush1.bf16.msra.mxu0 0
        %657 = vmatprep.subr.bf16.mxu0 0
        %658 = vmatpush1.bf16.msra.mxu0 0
        %659 = vmatprep.subr.bf16.mxu0 0
        %660 = vmatpush1.bf16.msra.mxu0 0
        %661 = vmatprep.subr.bf16.mxu0 0
        %662 = vmatpush1.bf16.msra.mxu0 0
        %663 = vmatprep.subr.bf16.mxu0 0
        %664 = vmatpush1.bf16.msra.mxu0 0
        %665 = vmatprep.subr.bf16.mxu0 0
        %666 = vmatpush1.bf16.msra.mxu0 0
        %667 = vmatprep.mubr.bf16.mxu0 0
        %668 = vmatmul.mubr.bf16.gmra.mrb[0].mxu0 %v630
        %v669 = vpop.f32.mrb[0].mxu0
        %v670 = vadd.f32 %v627, %v669
        %v671 = vpop.f32.mrb[0].mxu0
        %v672 = vpop.f32.mrb[0].mxu0
        %v673 = vpop.f32.mrb[0].mxu0
        %674 = vdwg.mxu0
        %v675 = vlaneseq
        %v676 = vshrl.u32 %v675, 7
        %v677 = vsub.s32 0, %v676
        %v678 = vrot.slane %v494, %v677
        %v679 = vadd.f32 %v670, %v678
        %vm680 = vcmp.ge.f32.partialorder %v679, 0.0
        %v681 = vmul.f32 %v679, 0.01
        %v682 = vsel %vm680, %v679, %v681
        %s683 = scalar_lea.vmem %s3, 16
        %v684 = vld [vmem:[%s683] sm:$0xf]
        %v685 = vld [vmem:[%s683 + $0x4] sm:$0xf]
        %v686 = vld [vmem:[%s683 + $0x8] sm:$0xf]
        %v687 = vld [vmem:[%s683 + $0xc] sm:$0xf]
        %v688 = vld [vmem:[#allocation2 + $0x2] sm:$0x1]
        %v689 = vpack.c.bf16 %v688, %v688
        %v690 = vld [vmem:[#allocation2 + $0x6] sm:$0x1]
        %v691 = vpack.c.bf16 %v682, %v682
        %v696 = vunpack.c.l.b16 %v684
        %v697 = vunpack.c.l.b16 %v685
        %v698 = vunpack.c.l.b16 %v686
        %v699 = vunpack.c.l.b16 %v687
        %v700 = vpack.c.b16 %v697, %v696
        %v701 = vpack.c.b16 %v699, %v698
        %v705 = vsel %vm508, %v691, 0
        %707 = vmatprep.subr.bf16.mxu0 0
        %708 = vmatpush1.bf16.msra.mxu0 %v700
        %709 = vmatprep.subr.bf16.mxu0 0
        %710 = vmatpush1.bf16.msra.mxu0 %v701
        %711 = vmatprep.subr.bf16.mxu0 0
        %712 = vmatpush1.bf16.msra.mxu0 0
        %713 = vmatprep.subr.bf16.mxu0 0
        %714 = vmatpush1.bf16.msra.mxu0 0
        %715 = vmatprep.subr.bf16.mxu0 0
        %716 = vmatpush1.bf16.msra.mxu0 0
        %717 = vmatprep.subr.bf16.mxu0 0
        %718 = vmatpush1.bf16.msra.mxu0 0
        %719 = vmatprep.subr.bf16.mxu0 0
        %720 = vmatpush1.bf16.msra.mxu0 0
        %721 = vmatprep.subr.bf16.mxu0 0
        %722 = vmatpush1.bf16.msra.mxu0 0
        %723 = vmatprep.subr.bf16.mxu0 0
        %724 = vmatpush1.bf16.msra.mxu0 0
        %725 = vmatprep.subr.bf16.mxu0 0
        %726 = vmatpush1.bf16.msra.mxu0 0
        %727 = vmatprep.subr.bf16.mxu0 0
        %728 = vmatpush1.bf16.msra.mxu0 0
        %729 = vmatprep.subr.bf16.mxu0 0
        %730 = vmatpush1.bf16.msra.mxu0 0
        %731 = vmatprep.subr.bf16.mxu0 0
        %732 = vmatpush1.bf16.msra.mxu0 0
        %733 = vmatprep.subr.bf16.mxu0 0
        %734 = vmatpush1.bf16.msra.mxu0 0
        %735 = vmatprep.subr.bf16.mxu0 0
        %736 = vmatpush1.bf16.msra.mxu0 0
        %737 = vmatprep.subr.bf16.mxu0 0
        %738 = vmatpush1.bf16.msra.mxu0 0
        %739 = vmatprep.mubr.bf16.mxu0 0
        %740 = vmatmul.mubr.bf16.gmra.mrb[0].mxu0 %v705
        %v741 = vpop.f32.mrb[0].mxu0
        %v742 = vadd.f32 0.0, %v741
        %v743 = vpop.f32.mrb[0].mxu0
        %v744 = vpop.f32.mrb[0].mxu0
        %v745 = vpop.f32.mrb[0].mxu0
        %746 = vdwg.mxu0
        %v748 = vsel %vm508, %v689, 0
        %750 = vmatprep.subr.bf16.mxu0 0
        %751 = vmatpush1.bf16.xpose.msra.mxu0 %v705
        %752 = vmatprep.subr.bf16.mxu0 0
        %753 = vmatpush1.bf16.xpose.msra.mxu0 0
        %754 = vmatprep.subr.bf16.mxu0 0
        %755 = vmatpush1.bf16.xpose.msra.mxu0 0
        %756 = vmatprep.subr.bf16.mxu0 0
        %757 = vmatpush1.bf16.xpose.msra.mxu0 0
        %758 = vmatprep.subr.bf16.mxu0 0
        %759 = vmatpush1.bf16.xpose.msra.mxu0 0
        %760 = vmatprep.subr.bf16.mxu0 0
        %761 = vmatpush1.bf16.xpose.msra.mxu0 0
        %762 = vmatprep.subr.bf16.mxu0 0
        %763 = vmatpush1.bf16.xpose.msra.mxu0 0
        %764 = vmatprep.subr.bf16.mxu0 0
        %765 = vmatpush1.bf16.xpose.msra.mxu0 0
        %766 = vmatprep.subr.bf16.mxu0 0
        %767 = vmatpush1.bf16.xpose.msra.mxu0 0
        %768 = vmatprep.subr.bf16.mxu0 0
        %769 = vmatpush1.bf16.xpose.msra.mxu0 0
        %770 = vmatprep.subr.bf16.mxu0 0
        %771 = vmatpush1.bf16.xpose.msra.mxu0 0
        %772 = vmatprep.subr.bf16.mxu0 0
        %773 = vmatpush1.bf16.xpose.msra.mxu0 0
        %774 = vmatprep.subr.bf16.mxu0 0
        %775 = vmatpush1.bf16.xpose.msra.mxu0 0
        %776 = vmatprep.subr.bf16.mxu0 0
        %777 = vmatpush1.bf16.xpose.msra.mxu0 0
        %778 = vmatprep.subr.bf16.mxu0 0
        %779 = vmatpush1.bf16.xpose.msra.mxu0 0
        %780 = vmatprep.subr.bf16.mxu0 0
        %781 = vmatpush1.bf16.xpose.msra.mxu0 0
        %782 = vmatprep.mubr.bf16.mxu0 0
        %783 = vmatmul.mubr.bf16.gmra.mrb[0].mxu0 %v748
        %v784 = vpop.f32.mrb[0].mxu0
        %v785 = vadd.f32 0.0, %v784
        %v786 = vpop.f32.mrb[0].mxu0
        %v787 = vpop.f32.mrb[0].mxu0
        %v788 = vpop.f32.mrb[0].mxu0
        %789 = vdwg.mxu0
        %791 = vset.pattern.permute.xlu0 64
        %792 = vperm.xlu0 %791, %v742
        %v793 = vpop.permute.xlu0 %792
        %v795 = vlaneseq
        %v796 = vshrl.u32 %v795, 7
        %v797 = vsub.s32 0, %v796
        %v798 = vrot.slane %v785, %v797
        %v799 = vadd.f32 %v793, %v798
        %vm800 = vcmp.ge.f32.partialorder %v799, 0.0
        %v801 = vmul.f32 %v799, 0.2
        %v802 = vsel %vm800, %v799, %v801
        %v803 = vld [vmem:[%s250] sm:$0x3]
        %v804 = vunpack.c.0.s8 %v803
        %v805 = vcvt.s32.f32 %v804
        %vm806 = vcmp.gt.f32.partialorder %v805, 0.0
        %v807 = vsel %vm806, %v802, -1e+30
        %v808 = vsel %vm416, %v807, -inf
        %809 = vmax.xlane.f32.xlu0 %v808
        %v810 = vpop.xlane.xlu0 %809
        %v811 = vsub.f32 %v807, %v810
        %v812 = vmul.f32 %v811, 1.442695
        %v813 = vpow.pop %v812
        %v814 = vsel %vm416, %v813, 0.0
        %815 = vadd.xlane.f32.xlu0 %v814
        %v816 = vpop.xlane.xlu0 %815
        %v817 = vrcp.pop %v816
        %v818 = vmul.f32 %v813, %v817
        %v819 = vpack.c.bf16 %v818, %v818
        %v820 = vpack.c.bf16 %v742, %v742
        %821 = vrot.lane.b32.xlu0 %v742, 96
        %v822 = vpop.permute.xlu0 %821
        %v825 = vsel %vm416, %v819, 0
        %v828 = vsel %vm436, %v820, 0
        %830 = vmatprep.subr.bf16.mxu0 0
        %831 = vmatpush1.bf16.msra.mxu0 %v828
        %832 = vmatprep.subr.bf16.mxu0 0
        %833 = vmatpush1.bf16.msra.mxu0 0
        %834 = vmatprep.subr.bf16.mxu0 0
        %835 = vmatpush1.bf16.msra.mxu0 0
        %836 = vmatprep.subr.bf16.mxu0 0
        %837 = vmatpush1.bf16.msra.mxu0 0
        %838 = vmatprep.subr.bf16.mxu0 0
        %839 = vmatpush1.bf16.msra.mxu0 0
        %840 = vmatprep.subr.bf16.mxu0 0
        %841 = vmatpush1.bf16.msra.mxu0 0
        %842 = vmatprep.subr.bf16.mxu0 0
        %843 = vmatpush1.bf16.msra.mxu0 0
        %844 = vmatprep.subr.bf16.mxu0 0
        %845 = vmatpush1.bf16.msra.mxu0 0
        %846 = vmatprep.subr.bf16.mxu0 0
        %847 = vmatpush1.bf16.msra.mxu0 0
        %848 = vmatprep.subr.bf16.mxu0 0
        %849 = vmatpush1.bf16.msra.mxu0 0
        %850 = vmatprep.subr.bf16.mxu0 0
        %851 = vmatpush1.bf16.msra.mxu0 0
        %852 = vmatprep.subr.bf16.mxu0 0
        %853 = vmatpush1.bf16.msra.mxu0 0
        %854 = vmatprep.subr.bf16.mxu0 0
        %855 = vmatpush1.bf16.msra.mxu0 0
        %856 = vmatprep.subr.bf16.mxu0 0
        %857 = vmatpush1.bf16.msra.mxu0 0
        %858 = vmatprep.subr.bf16.mxu0 0
        %859 = vmatpush1.bf16.msra.mxu0 0
        %860 = vmatprep.subr.bf16.mxu0 0
        %861 = vmatpush1.bf16.msra.mxu0 0
        %862 = vmatprep.mubr.bf16.mxu0 0
        %863 = vmatmul.mubr.bf16.gmra.mrb[0].mxu0 %v825
        %v864 = vpop.f32.mrb[0].mxu0
        %v865 = vadd.f32 %v822, %v864
        %v866 = vpop.f32.mrb[0].mxu0
        %v867 = vpop.f32.mrb[0].mxu0
        %v868 = vpop.f32.mrb[0].mxu0
        %869 = vdwg.mxu0
        %v870 = vlaneseq
        %v871 = vshrl.u32 %v870, 7
        %v872 = vsub.s32 0, %v871
        %v873 = vrot.slane %v690, %v872
        %v874 = vadd.f32 %v865, %v873
        %vm875 = vcmp.ge.f32.partialorder %v874, 0.0
        %v876 = vmul.f32 %v874, 0.01
        %v877 = vsel %vm875, %v874, %v876
        %s878 = scalar_lea.vmem %s3, 32
        %v879 = vld [vmem:[%s878] sm:$0xf]
        %v880 = vld [vmem:[%s878 + $0x4] sm:$0xf]
        %v881 = vld [vmem:[%s878 + $0x8] sm:$0xf]
        %v882 = vld [vmem:[%s878 + $0xc] sm:$0xf]
        %v883 = vld [vmem:[#allocation2 + $0x3] sm:$0x1]
        %v884 = vpack.c.bf16 %v883, %v883
        %v885 = vld [vmem:[#allocation2 + $0x7] sm:$0x1]
        %v886 = vpack.c.bf16 %v877, %v877
        %v891 = vunpack.c.l.b16 %v879
        %v892 = vunpack.c.l.b16 %v880
        %v893 = vunpack.c.l.b16 %v881
        %v894 = vunpack.c.l.b16 %v882
        %v895 = vpack.c.b16 %v892, %v891
        %v896 = vpack.c.b16 %v894, %v893
        %v900 = vsel %vm508, %v886, 0
        %902 = vmatprep.subr.bf16.mxu0 0
        %903 = vmatpush1.bf16.msra.mxu0 %v895
        %904 = vmatprep.subr.bf16.mxu0 0
        %905 = vmatpush1.bf16.msra.mxu0 %v896
        %906 = vmatprep.subr.bf16.mxu0 0
        %907 = vmatpush1.bf16.msra.mxu0 0
        %908 = vmatprep.subr.bf16.mxu0 0
        %909 = vmatpush1.bf16.msra.mxu0 0
        %910 = vmatprep.subr.bf16.mxu0 0
        %911 = vmatpush1.bf16.msra.mxu0 0
        %912 = vmatprep.subr.bf16.mxu0 0
        %913 = vmatpush1.bf16.msra.mxu0 0
        %914 = vmatprep.subr.bf16.mxu0 0
        %915 = vmatpush1.bf16.msra.mxu0 0
        %916 = vmatprep.subr.bf16.mxu0 0
        %917 = vmatpush1.bf16.msra.mxu0 0
        %918 = vmatprep.subr.bf16.mxu0 0
        %919 = vmatpush1.bf16.msra.mxu0 0
        %920 = vmatprep.subr.bf16.mxu0 0
        %921 = vmatpush1.bf16.msra.mxu0 0
        %922 = vmatprep.subr.bf16.mxu0 0
        %923 = vmatpush1.bf16.msra.mxu0 0
        %924 = vmatprep.subr.bf16.mxu0 0
        %925 = vmatpush1.bf16.msra.mxu0 0
        %926 = vmatprep.subr.bf16.mxu0 0
        %927 = vmatpush1.bf16.msra.mxu0 0
        %928 = vmatprep.subr.bf16.mxu0 0
        %929 = vmatpush1.bf16.msra.mxu0 0
        %930 = vmatprep.subr.bf16.mxu0 0
        %931 = vmatpush1.bf16.msra.mxu0 0
        %932 = vmatprep.subr.bf16.mxu0 0
        %933 = vmatpush1.bf16.msra.mxu0 0
        %934 = vmatprep.mubr.bf16.mxu0 0
        %935 = vmatmul.mubr.bf16.gmra.mrb[0].mxu0 %v900
        %v936 = vpop.f32.mrb[0].mxu0
        %v937 = vadd.f32 0.0, %v936
        %v938 = vpop.f32.mrb[0].mxu0
        %v939 = vpop.f32.mrb[0].mxu0
        %v940 = vpop.f32.mrb[0].mxu0
        %941 = vdwg.mxu0
        %v943 = vsel %vm508, %v884, 0
        %945 = vmatprep.subr.bf16.mxu0 0
        %946 = vmatpush1.bf16.xpose.msra.mxu0 %v900
        %947 = vmatprep.subr.bf16.mxu0 0
        %948 = vmatpush1.bf16.xpose.msra.mxu0 0
        %949 = vmatprep.subr.bf16.mxu0 0
        %950 = vmatpush1.bf16.xpose.msra.mxu0 0
        %951 = vmatprep.subr.bf16.mxu0 0
        %952 = vmatpush1.bf16.xpose.msra.mxu0 0
        %953 = vmatprep.subr.bf16.mxu0 0
        %954 = vmatpush1.bf16.xpose.msra.mxu0 0
        %955 = vmatprep.subr.bf16.mxu0 0
        %956 = vmatpush1.bf16.xpose.msra.mxu0 0
        %957 = vmatprep.subr.bf16.mxu0 0
        %958 = vmatpush1.bf16.xpose.msra.mxu0 0
        %959 = vmatprep.subr.bf16.mxu0 0
        %960 = vmatpush1.bf16.xpose.msra.mxu0 0
        %961 = vmatprep.subr.bf16.mxu0 0
        %962 = vmatpush1.bf16.xpose.msra.mxu0 0
        %963 = vmatprep.subr.bf16.mxu0 0
        %964 = vmatpush1.bf16.xpose.msra.mxu0 0
        %965 = vmatprep.subr.bf16.mxu0 0
        %966 = vmatpush1.bf16.xpose.msra.mxu0 0
        %967 = vmatprep.subr.bf16.mxu0 0
        %968 = vmatpush1.bf16.xpose.msra.mxu0 0
        %969 = vmatprep.subr.bf16.mxu0 0
        %970 = vmatpush1.bf16.xpose.msra.mxu0 0
        %971 = vmatprep.subr.bf16.mxu0 0
        %972 = vmatpush1.bf16.xpose.msra.mxu0 0
        %973 = vmatprep.subr.bf16.mxu0 0
        %974 = vmatpush1.bf16.xpose.msra.mxu0 0
        %975 = vmatprep.subr.bf16.mxu0 0
        %976 = vmatpush1.bf16.xpose.msra.mxu0 0
        %977 = vmatprep.mubr.bf16.mxu0 0
        %978 = vmatmul.mubr.bf16.gmra.mrb[0].mxu0 %v943
        %v979 = vpop.f32.mrb[0].mxu0
        %v980 = vadd.f32 0.0, %v979
        %v981 = vpop.f32.mrb[0].mxu0
        %v982 = vpop.f32.mrb[0].mxu0
        %v983 = vpop.f32.mrb[0].mxu0
        %984 = vdwg.mxu0
        %986 = vset.pattern.permute.xlu0 64
        %987 = vperm.xlu0 %986, %v937
        %v988 = vpop.permute.xlu0 %987
        %v990 = vlaneseq
        %v991 = vshrl.u32 %v990, 7
        %v992 = vsub.s32 0, %v991
        %v993 = vrot.slane %v980, %v992
        %v994 = vadd.f32 %v988, %v993
        %vm995 = vcmp.ge.f32.partialorder %v994, 0.0
        %v996 = vmul.f32 %v994, 0.2
        %v997 = vsel %vm995, %v994, %v996
        %v998 = vld [vmem:[%s250] sm:$0x3]
        %v999 = vunpack.c.0.s8 %v998
        %v1000 = vcvt.s32.f32 %v999
        %vm1001 = vcmp.gt.f32.partialorder %v1000, 0.0
        %v1002 = vsel %vm1001, %v997, -1e+30
        %v1003 = vsel %vm416, %v1002, -inf
        %1004 = vmax.xlane.f32.xlu0 %v1003
        %v1005 = vpop.xlane.xlu0 %1004
        %v1006 = vsub.f32 %v1002, %v1005
        %v1007 = vmul.f32 %v1006, 1.442695
        %v1008 = vpow.pop %v1007
        %v1009 = vsel %vm416, %v1008, 0.0
        %1010 = vadd.xlane.f32.xlu0 %v1009
        %v1011 = vpop.xlane.xlu0 %1010
        %v1012 = vrcp.pop %v1011
        %v1013 = vmul.f32 %v1008, %v1012
        %v1014 = vpack.c.bf16 %v1013, %v1013
        %v1015 = vpack.c.bf16 %v937, %v937
        %1016 = vrot.lane.b32.xlu0 %v937, 96
        %v1017 = vpop.permute.xlu0 %1016
        %v1020 = vsel %vm416, %v1014, 0
        %v1023 = vsel %vm436, %v1015, 0
        %1025 = vmatprep.subr.bf16.mxu0 0
        %1026 = vmatpush1.bf16.msra.mxu0 %v1023
        %1027 = vmatprep.subr.bf16.mxu0 0
        %1028 = vmatpush1.bf16.msra.mxu0 0
        %1029 = vmatprep.subr.bf16.mxu0 0
        %1030 = vmatpush1.bf16.msra.mxu0 0
        %1031 = vmatprep.subr.bf16.mxu0 0
        %1032 = vmatpush1.bf16.msra.mxu0 0
        %1033 = vmatprep.subr.bf16.mxu0 0
        %1034 = vmatpush1.bf16.msra.mxu0 0
        %1035 = vmatprep.subr.bf16.mxu0 0
        %1036 = vmatpush1.bf16.msra.mxu0 0
        %1037 = vmatprep.subr.bf16.mxu0 0
        %1038 = vmatpush1.bf16.msra.mxu0 0
        %1039 = vmatprep.subr.bf16.mxu0 0
        %1040 = vmatpush1.bf16.msra.mxu0 0
        %1041 = vmatprep.subr.bf16.mxu0 0
        %1042 = vmatpush1.bf16.msra.mxu0 0
        %1043 = vmatprep.subr.bf16.mxu0 0
        %1044 = vmatpush1.bf16.msra.mxu0 0
        %1045 = vmatprep.subr.bf16.mxu0 0
        %1046 = vmatpush1.bf16.msra.mxu0 0
        %1047 = vmatprep.subr.bf16.mxu0 0
        %1048 = vmatpush1.bf16.msra.mxu0 0
        %1049 = vmatprep.subr.bf16.mxu0 0
        %1050 = vmatpush1.bf16.msra.mxu0 0
        %1051 = vmatprep.subr.bf16.mxu0 0
        %1052 = vmatpush1.bf16.msra.mxu0 0
        %1053 = vmatprep.subr.bf16.mxu0 0
        %1054 = vmatpush1.bf16.msra.mxu0 0
        %1055 = vmatprep.subr.bf16.mxu0 0
        %1056 = vmatpush1.bf16.msra.mxu0 0
        %1057 = vmatprep.mubr.bf16.mxu0 0
        %1058 = vmatmul.mubr.bf16.gmra.mrb[0].mxu0 %v1020
        %v1059 = vpop.f32.mrb[0].mxu0
        %v1060 = vadd.f32 %v1017, %v1059
        %v1061 = vpop.f32.mrb[0].mxu0
        %v1062 = vpop.f32.mrb[0].mxu0
        %v1063 = vpop.f32.mrb[0].mxu0
        %1064 = vdwg.mxu0
        %v1065 = vlaneseq
        %v1066 = vshrl.u32 %v1065, 7
        %v1067 = vsub.s32 0, %v1066
        %v1068 = vrot.slane %v885, %v1067
        %v1069 = vadd.f32 %v1060, %v1068
        %v1070 = vld [vmem:[%s246] sm:$0xff]
        %1072 = vset.pattern.permute.xlu0 93
        %1073 = vperm.xlu0 %1072, %v1070
        %v1074 = vpop.permute.xlu0 %1073
        %v1076 = vmul.f32 %v1074, %v1069
        %v1077 = vsub.f32 %v1070, 1.0
        %v1078 = vmul.f32 %v1077, 1e+30
        %1080 = vset.pattern.permute.xlu0 94
        %1081 = vperm.xlu0 %1080, %v1078
        %v1082 = vpop.permute.xlu0 %1081
        %v1084 = vadd.f32 %v1076, %v1082
        %v1085 = vsel %vm508, %v1084, -inf
        %v1086 = vrot.slane %v1085, 4
        %v1087 = vmax.f32 %v1085, %v1086
        %v1088 = vrot.slane %v1087, 2
        %v1089 = vmax.f32 %v1087, %v1088
        %v1090 = vrot.slane %v1089, 1
        %v1091 = vmax.f32 %v1089, %v1090
        %vm1092 = vcmp.ge.f32.partialorder %v1091, 0.0
        %v1093 = vmul.f32 %v1091, 0.01
        %v1094 = vsel %vm1092, %v1091, %v1093
        %v1095 = vld [vmem:[#allocation2 + $0x8] sm:$0xff]
        %v1096 = vld [vmem:[#allocation2 + $0x10] sm:$0xff]
        %v1097 = vld [vmem:[#allocation2 + $0x18] sm:$0xff]
        %v1098 = vld [vmem:[#allocation2 + $0x20] sm:$0xff]
        %v1099 = vpack.c.bf16 %v1096, %v1095
        %v1100 = vpack.c.bf16 %v1098, %v1097
        %v1101 = vld [vmem:[#allocation2 + $0x28] sm:$0x1]
        %v1102 = vpack.c.bf16 %v1094, %v1094
        %v1104 = vsel %vm508, %v1102, 0
        %1106 = vmatprep.subr.bf16.mxu0 0
        %1107 = vmatpush1.bf16.msra.mxu0 %v1099
        %1108 = vmatprep.subr.bf16.mxu0 0
        %1109 = vmatpush1.bf16.msra.mxu0 %v1100
        %1110 = vmatprep.subr.bf16.mxu0 0
        %1111 = vmatpush1.bf16.msra.mxu0 0
        %1112 = vmatprep.subr.bf16.mxu0 0
        %1113 = vmatpush1.bf16.msra.mxu0 0
        %1114 = vmatprep.subr.bf16.mxu0 0
        %1115 = vmatpush1.bf16.msra.mxu0 0
        %1116 = vmatprep.subr.bf16.mxu0 0
        %1117 = vmatpush1.bf16.msra.mxu0 0
        %1118 = vmatprep.subr.bf16.mxu0 0
        %1119 = vmatpush1.bf16.msra.mxu0 0
        %1120 = vmatprep.subr.bf16.mxu0 0
        %1121 = vmatpush1.bf16.msra.mxu0 0
        %1122 = vmatprep.subr.bf16.mxu0 0
        %1123 = vmatpush1.bf16.msra.mxu0 0
        %1124 = vmatprep.subr.bf16.mxu0 0
        %1125 = vmatpush1.bf16.msra.mxu0 0
        %1126 = vmatprep.subr.bf16.mxu0 0
        %1127 = vmatpush1.bf16.msra.mxu0 0
        %1128 = vmatprep.subr.bf16.mxu0 0
        %1129 = vmatpush1.bf16.msra.mxu0 0
        %1130 = vmatprep.subr.bf16.mxu0 0
        %1131 = vmatpush1.bf16.msra.mxu0 0
        %1132 = vmatprep.subr.bf16.mxu0 0
        %1133 = vmatpush1.bf16.msra.mxu0 0
        %1134 = vmatprep.subr.bf16.mxu0 0
        %1135 = vmatpush1.bf16.msra.mxu0 0
        %1136 = vmatprep.subr.bf16.mxu0 0
        %1137 = vmatpush1.bf16.msra.mxu0 0
        %1138 = vmatprep.mubr.bf16.mxu0 0
        %1139 = vmatmul.mubr.bf16.gmra.mrb[0].mxu0 %v1104
        %v1140 = vpop.f32.mrb[0].mxu0
        %v1141 = vadd.f32 %v1101, %v1140
        %v1142 = vpop.f32.mrb[0].mxu0
        %v1143 = vpop.f32.mrb[0].mxu0
        %v1144 = vpop.f32.mrb[0].mxu0
        %1145 = vdwg.mxu0
        %1146 = vst [vmem:[%s242] sm:$0x1] %v1141
        %s1147 = sand.u32 %s143, 1
        %s1148 = scalar_lea.sflag [#allocation4], %s1147
        %s1149 = sand.u32 %s143, 1
        %s1150 = scalar_lea.vmem [#allocation5], %s1149
        // Predicated region
        $region45: #{_lambda_.1} parent=39 // pred_check
          %p1151 = pneg %p153
        $region46: #{_lambda_.1} parent=39 // pred_check_branch
          %1153 = sbr.rel (%p1151) target = $region48
        $region47: #{_lambda_.1} parent=39 // pred_region
          %s1155 = ssub.s32 16, 16
          %1156 = vsyncadd %s1148, %s1155
          %s1157 = smul.addr %s20, 16
          %s1158 = scalar_lea.hbm %s5, %s1157
          %s1160 = sshll.u32 %s1150, 4
          %s1161 = int_to_ptr.vmem [resolvable:$true] %s1160
          %1163 = dma.vmem_to_hbm [thread:$0]  %s1161, 16, %s1158, %s1148
        $region48: #{_lambda_.1} parent=39 // pred_fallthru
          _
      $region40: #{_lambda_.1} parent=5 // pred_fallthru
        _
      %p1164 = scmp.le.s32.totalorder 2, %s15
      // Predicated region
      $region49: #{_lambda_.1} parent=5 // pred_check
        %p1165 = pneg %p1164
      $region50: #{_lambda_.1} parent=5 // pred_check_branch
        %1167 = sbr.rel (%p1165) target = $region52
      $region51: #{_lambda_.1} parent=5 // pred_region
        %s1168 = ssub.s32 %s15, 2
        // Predicated region
        $region53: #{_lambda_.1} parent=51 // pred_check
          %p1169 = pneg %p159
        $region54: #{_lambda_.1} parent=51 // pred_check_branch
          %1171 = sbr.rel (%p1169) target = $region56
        $region55: #{_lambda_.1} parent=51 // pred_region
          %s1172 = sand.u32 %s144, 1
          %s1173 = scalar_lea.sflag [#allocation4], %s1172
          %s1174 = sand.u32 %s144, 1
          %s1175 = scalar_lea.vmem [#allocation5], %s1174
          %1176 = dma.done %s1173, 16
        $region56: #{_lambda_.1} parent=51 // pred_fallthru
          _
      $region52: #{_lambda_.1} parent=5 // pred_fallthru
        _
    $region6: #{_lambda_.1} parent=1 // loop_footer
      %s19 = sadd.s32 1, %s15
    $region7: #{_lambda_.1} parent=1 // loop_footer_branch
      %14 = sbr.rel target = $region3
    $region8: #{_lambda_.1} parent=1 // loop_exit
      _
    %1177 = vsyncpa [#allocation3], 1
    %s1178 = scalar_lea.sflag [#allocation3], 1
    %1179 = vsyncpa %s1178, 1
    %1180 = vsyncpa [#allocation4], 1
    %s1181 = scalar_lea.sflag [#allocation4], 1
    %1182 = vsyncpa %s1181, 1

</llo_original>
